<compile_context>
chip_gen: v6e
topology: v6e:2x2x1
jax: 0.10.0
libtpu: 0.0.40
codegen_flags: <defaults>
</compile_context>

<pallas_src>
import math

import jax
import jax.numpy as jnp
from jax.experimental import pallas as pl
from jax.experimental.pallas import tpu as pltpu

IMG_DIM = 784      # 28*28, fixed by the module
H1, H2 = 512, 256
HEAD_PAD = 128     # pad the 1-wide sigmoid head to a full lane width
BN_EPS = 1e-5


def discriminator_kernel(img_ref, lbl_ref,
                         w1i_ref, embp_ref, b1_ref,
                         w2_ref, b2_ref,
                         gamma_ref, beta_ref,
                         w3_ref, b3_ref,
                         o_ref):
    """Full MLP forward for one batch resident in VMEM.

    img_ref:  (B, 784) bf16          lbl_ref: (B, 1) int32
    w1i_ref:  (784, 512) bf16        embp_ref: (Cpad, 512) bf16  (= embedding @ W1_emb)
    b1_ref:   (1, 512) f32
    w2_ref:   (512, 256) bf16        b2_ref:  (1, 256) f32
    gamma_ref/beta_ref: (1, 256) f32 (BatchNorm1d affine params)
    w3_ref:   (256, HEAD_PAD) bf16 (zero-padded)   b3_ref: (1, HEAD_PAD) f32
    o_ref:    (B, HEAD_PAD) f32 (only column 0 is meaningful)
    """
    B = img_ref.shape[0]
    cpad = embp_ref.shape[0]

    # ---- label one-hot built in-kernel (replaces the external embedding gather)
    classes = jax.lax.broadcasted_iota(jnp.int32, (B, cpad), 1)
    onehot = (lbl_ref[...] == classes).astype(jnp.bfloat16)          # (B, Cpad)

    # ---- Linear(784+emb -> 512) as a split matmul (no concat) + LeakyReLU(0.2)
    h1 = (jnp.dot(img_ref[...], w1i_ref[...], preferred_element_type=jnp.float32)
          + jnp.dot(onehot, embp_ref[...], preferred_element_type=jnp.float32)
          + b1_ref[...])
    h1 = jnp.maximum(h1, 0.2 * h1)

    # ---- Linear(512 -> 256)
    h2 = jnp.dot(h1.astype(jnp.bfloat16), w2_ref[...],
                 preferred_element_type=jnp.float32) + b2_ref[...]

    # ---- BatchNorm1d(256), training mode (biased batch stats), single pass:
    #      var = E[x^2] - E[x]^2 ; fold gamma into one scale/shift FMA.
    inv_b = 1.0 / B
    mean = jnp.sum(h2, axis=0, keepdims=True) * inv_b
    mean_sq = jnp.sum(h2 * h2, axis=0, keepdims=True) * inv_b
    var = mean_sq - mean * mean
    scale = gamma_ref[...] * jax.lax.rsqrt(var + BN_EPS)
    shift = beta_ref[...] - mean * scale
    h2n = h2 * scale + shift

    # ---- LeakyReLU(0.2)
    h2n = jnp.maximum(h2n, 0.2 * h2n)

    # ---- Linear(256 -> 1) padded to 128 lanes + Sigmoid; lane-dense store.
    h3 = jnp.dot(h2n.astype(jnp.bfloat16), w3_ref[...],
                 preferred_element_type=jnp.float32) + b3_ref[...]
    o_ref[...] = jax.nn.sigmoid(h3)


def _discriminator_forward(image, label, params):
    """image: (B, 1, 28, 28) f32, label: (B,) int  ->  (B, 1) f32 in [0, 1]."""
    B = image.shape[0]
    cpad = params["emb_proj"].shape[0]

    # Glue (fuses under jit): flatten + pre-cast activations to bf16 (halves
    # activation DMA, keeps the kernel body pure MXU/VPU).
    flat = image.reshape(B, IMG_DIM).astype(jnp.bfloat16)   # (B, 784) bf16
    lbl = label.astype(jnp.int32).reshape(B, 1)              # (B, 1) int32

    # Advisory cost so XLA overlaps this small custom call with neighbors.
    flops = 2 * B * (IMG_DIM * H1 + cpad * H1 + H1 * H2 + H2 * HEAD_PAD)
    weight_bytes = 2 * (IMG_DIM * H1 + cpad * H1 + H1 * H2 + H2 * HEAD_PAD)
    small_bytes = 4 * (H1 + H2 + H2 + H2 + HEAD_PAD)
    io_bytes = 2 * B * IMG_DIM + 4 * B + 4 * B * HEAD_PAD
    cost = pl.CostEstimate(flops=flops,
                           transcendentals=B * HEAD_PAD + H2,
                           bytes_accessed=weight_bytes + small_bytes + io_bytes)

    vmem = pl.BlockSpec(memory_space=pltpu.MemorySpace.VMEM)
    out_pad = pl.pallas_call(
        discriminator_kernel,
        out_shape=jax.ShapeDtypeStruct((B, HEAD_PAD), jnp.float32),
        in_specs=[vmem] * 11,
        out_specs=vmem,
        cost_estimate=cost,
        # Honest, tight cap (~2-3 MB actual footprint) -> leaves headroom for
        # XLA to co-schedule surrounding generator/loss ops; v7x only has
        # 64 MiB VMEM per TensorCore.
        compiler_params=pltpu.CompilerParams(vmem_limit_bytes=8 << 20),
    )(flat, lbl,
      params["w1_img"], params["emb_proj"], params["b1"],
      params["w2"], params["b2"],
      params["gamma"], params["beta"],
      params["w3"], params["b3"])

    # Consumers on the hot path (e.g. a fused BCE loss) can take the padded
    # (B, 128) output directly and read column 0; slice kept here for strict
    # (B, 1) parity with the PyTorch module.
    return out_pad[:, :1]


discriminator_forward = jax.jit(_discriminator_forward)


def _round_up(x, m):
    return ((x + m - 1) // m) * m


def init_params(key, class_size, embedding_dim):
    """Deterministic synthetic init (mimics PyTorch default init shapes/ranges).

    Matmul weights are stored bf16 (halves HBM->VMEM weight traffic, native
    MXU dtype); biases / BN affine params stay f32.  The embedding branch of
    layer 1 is pre-folded: emb_proj = embedding @ W1[784:]  (computed in f32,
    then cast), padded along the class axis to a multiple of 8 sublanes.
    """
    ks = jax.random.split(key, 8)

    def linear(kw, kb, fan_in, fan_out):
        bound = 1.0 / math.sqrt(fan_in)
        w = jax.random.uniform(kw, (fan_in, fan_out), jnp.float32, -bound, bound)
        b = jax.random.uniform(kb, (1, fan_out), jnp.float32, -bound, bound)
        return w, b

    in_dim = IMG_DIM + embedding_dim
    w1, b1 = linear(ks[0], ks[1], in_dim, H1)
    w2, b2 = linear(ks[2], ks[3], H1, H2)
    w3, b3 = linear(ks[4], ks[5], H2, 1)
    embedding = jax.random.normal(ks[6], (class_size, embedding_dim), jnp.float32)

    # Fold the embedding lookup + its slice of W1 into one small table.
    emb_proj = embedding @ w1[IMG_DIM:]                     # (class_size, 512) f32
    cpad = _round_up(class_size, 8)
    emb_proj_pad = jnp.zeros((cpad, H1), jnp.float32).at[:class_size].set(emb_proj)

    # Zero-pad the head weight/bias to 128 lanes (lane-dense output store).
    w3_pad = jnp.zeros((H2, HEAD_PAD), jnp.float32).at[:, :1].set(w3)
    b3_pad = jnp.zeros((1, HEAD_PAD), jnp.float32).at[:, :1].set(b3)

    return {
        "w1_img": w1[:IMG_DIM].astype(jnp.bfloat16),
        "emb_proj": emb_proj_pad.astype(jnp.bfloat16),
        "b1": b1,
        "w2": w2.astype(jnp.bfloat16), "b2": b2,
        "gamma": jnp.ones((1, H2), jnp.float32),
        "beta": jnp.zeros((1, H2), jnp.float32),
        "w3": w3_pad.astype(jnp.bfloat16), "b3": b3_pad,
    }


if __name__ == "__main__":
    class_size = 10
    embedding_dim = 32
    # Whole batch runs in one call: the ~1.1 MB weight DMA and the fixed call
    # overhead are amortized over all rows (fuse real+fake rows per D step for
    # even better amortization).
    B = 64

    key = jax.random.PRNGKey(0)
    k_img, k_lbl, k_par = jax.random.split(key, 3)

    image = jax.random.normal(k_img, (B, 1, 28, 28), jnp.float32)
    label = jax.random.randint(k_lbl, (B,), 0, class_size, jnp.int32)
    params = init_params(k_par, class_size, embedding_dim)

    out = discriminator_forward(image, label, params)
    out = jax.block_until_ready(out)
    assert out.shape == (B, 1)
    assert bool(jnp.all(jnp.isfinite(out)))
    assert bool(jnp.all((out >= 0.0) & (out <= 1.0)))
    print("KERNEL_OK")
</pallas_src>

<mosaic_0001>
module attributes {stable_mosaic.version = 11 : i64} {
  func.func @discriminator_kernel(%arg0: memref<64x784xbf16, #tpu.memory_space<vmem>>, %arg1: memref<64x1xi32, #tpu.memory_space<vmem>>, %arg2: memref<784x512xbf16, #tpu.memory_space<vmem>>, %arg3: memref<16x512xbf16, #tpu.memory_space<vmem>>, %arg4: memref<1x512xf32, #tpu.memory_space<vmem>>, %arg5: memref<512x256xbf16, #tpu.memory_space<vmem>>, %arg6: memref<1x256xf32, #tpu.memory_space<vmem>>, %arg7: memref<1x256xf32, #tpu.memory_space<vmem>>, %arg8: memref<1x256xf32, #tpu.memory_space<vmem>>, %arg9: memref<256x128xbf16, #tpu.memory_space<vmem>>, %arg10: memref<1x128xf32, #tpu.memory_space<vmem>>, %arg11: memref<64x128xf32, #tpu.memory_space<vmem>>) attributes {dimension_semantics = [], scalar_prefetch = 0 : i64, scratch_operands = 0 : i64, tpu.core_type = #tpu.core_type<tc>} {
    %0 = tpu.iota {dimensions = array<i32: 1>} : vector<64x16xi32>
    %c0 = arith.constant 0 : index
    %c0_0 = arith.constant 0 : index
    %1 = vector.load %arg1[%c0, %c0_0] : memref<64x1xi32, #tpu.memory_space<vmem>>, vector<64x1xi32>
    %2 = vector.broadcast %1 : vector<64x1xi32> to vector<64x16xi32>
    %3 = arith.cmpi eq, %2, %0 : vector<64x16xi32>
    %4 = arith.extui %3 : vector<64x16xi1> to vector<64x16xi32>
    %5 = arith.sitofp %4 : vector<64x16xi32> to vector<64x16xf32>
    %6 = arith.truncf %5 : vector<64x16xf32> to vector<64x16xbf16>
    %c0_1 = arith.constant 0 : index
    %c0_2 = arith.constant 0 : index
    %7 = vector.load %arg0[%c0_1, %c0_2] : memref<64x784xbf16, #tpu.memory_space<vmem>>, vector<64x784xbf16>
    %c0_3 = arith.constant 0 : index
    %c0_4 = arith.constant 0 : index
    %8 = vector.load %arg2[%c0_3, %c0_4] : memref<784x512xbf16, #tpu.memory_space<vmem>>, vector<784x512xbf16>
    %cst = arith.constant dense<0.000000e+00> : vector<64x512xf32>
    %9 = tpu.matmul %7, %8, %cst {dimension_numbers = #tpu.dot_dimension_numbers<[1], [0], [0], [1], [0, 0, 1, 1], [], []>} : vector<64x784xbf16>, vector<784x512xbf16>, vector<64x512xf32> -> vector<64x512xf32>
    %c0_5 = arith.constant 0 : index
    %c0_6 = arith.constant 0 : index
    %10 = vector.load %arg3[%c0_5, %c0_6] : memref<16x512xbf16, #tpu.memory_space<vmem>>, vector<16x512xbf16>
    %cst_7 = arith.constant dense<0.000000e+00> : vector<64x512xf32>
    %11 = tpu.matmul %6, %10, %cst_7 {dimension_numbers = #tpu.dot_dimension_numbers<[1], [0], [0], [1], [0, 0, 1, 1], [], []>} : vector<64x16xbf16>, vector<16x512xbf16>, vector<64x512xf32> -> vector<64x512xf32>
    %12 = arith.addf %9, %11 : vector<64x512xf32>
    %c0_8 = arith.constant 0 : index
    %c0_9 = arith.constant 0 : index
    %13 = vector.load %arg4[%c0_8, %c0_9] : memref<1x512xf32, #tpu.memory_space<vmem>>, vector<1x512xf32>
    %14 = vector.broadcast %13 : vector<1x512xf32> to vector<64x512xf32>
    %15 = arith.addf %12, %14 : vector<64x512xf32>
    %cst_10 = arith.constant 2.000000e-01 : f32
    %16 = vector.broadcast %cst_10 : f32 to vector<64x512xf32>
    %17 = arith.mulf %16, %15 : vector<64x512xf32>
    %18 = arith.maximumf %15, %17 : vector<64x512xf32>
    %19 = arith.truncf %18 : vector<64x512xf32> to vector<64x512xbf16>
    %c0_11 = arith.constant 0 : index
    %c0_12 = arith.constant 0 : index
    %20 = vector.load %arg5[%c0_11, %c0_12] : memref<512x256xbf16, #tpu.memory_space<vmem>>, vector<512x256xbf16>
    %cst_13 = arith.constant dense<0.000000e+00> : vector<64x256xf32>
    %21 = tpu.matmul %19, %20, %cst_13 {dimension_numbers = #tpu.dot_dimension_numbers<[1], [0], [0], [1], [0, 0, 1, 1], [], []>} : vector<64x512xbf16>, vector<512x256xbf16>, vector<64x256xf32> -> vector<64x256xf32>
    %c0_14 = arith.constant 0 : index
    %c0_15 = arith.constant 0 : index
    %22 = vector.load %arg6[%c0_14, %c0_15] : memref<1x256xf32, #tpu.memory_space<vmem>>, vector<1x256xf32>
    %23 = vector.broadcast %22 : vector<1x256xf32> to vector<64x256xf32>
    %24 = arith.addf %21, %23 : vector<64x256xf32>
    %cst_16 = arith.constant dense<0.000000e+00> : vector<256xf32>
    %25 = vector.multi_reduction <add>, %24, %cst_16 [0] : vector<64x256xf32> to vector<256xf32>
    %26 = vector.shape_cast %25 : vector<256xf32> to vector<1x256xf32>
    %cst_17 = arith.constant 1.562500e-02 : f32
    %27 = vector.broadcast %cst_17 : f32 to vector<1x256xf32>
    %28 = arith.mulf %26, %27 : vector<1x256xf32>
    %29 = arith.mulf %24, %24 : vector<64x256xf32>
    %cst_18 = arith.constant dense<0.000000e+00> : vector<256xf32>
    %30 = vector.multi_reduction <add>, %29, %cst_18 [0] : vector<64x256xf32> to vector<256xf32>
    %31 = vector.shape_cast %30 : vector<256xf32> to vector<1x256xf32>
    %cst_19 = arith.constant 1.562500e-02 : f32
    %32 = vector.broadcast %cst_19 : f32 to vector<1x256xf32>
    %33 = arith.mulf %31, %32 : vector<1x256xf32>
    %34 = arith.mulf %28, %28 : vector<1x256xf32>
    %35 = arith.subf %33, %34 : vector<1x256xf32>
    %c0_20 = arith.constant 0 : index
    %c0_21 = arith.constant 0 : index
    %36 = vector.load %arg7[%c0_20, %c0_21] : memref<1x256xf32, #tpu.memory_space<vmem>>, vector<1x256xf32>
    %cst_22 = arith.constant 9.99999974E-6 : f32
    %37 = vector.broadcast %cst_22 : f32 to vector<1x256xf32>
    %38 = arith.addf %35, %37 : vector<1x256xf32>
    %39 = math.rsqrt %38 : vector<1x256xf32>
    %40 = arith.mulf %36, %39 : vector<1x256xf32>
    %c0_23 = arith.constant 0 : index
    %c0_24 = arith.constant 0 : index
    %41 = vector.load %arg8[%c0_23, %c0_24] : memref<1x256xf32, #tpu.memory_space<vmem>>, vector<1x256xf32>
    %42 = arith.mulf %28, %40 : vector<1x256xf32>
    %43 = arith.subf %41, %42 : vector<1x256xf32>
    %44 = vector.broadcast %40 : vector<1x256xf32> to vector<64x256xf32>
    %45 = arith.mulf %24, %44 : vector<64x256xf32>
    %46 = vector.broadcast %43 : vector<1x256xf32> to vector<64x256xf32>
    %47 = arith.addf %45, %46 : vector<64x256xf32>
    %cst_25 = arith.constant 2.000000e-01 : f32
    %48 = vector.broadcast %cst_25 : f32 to vector<64x256xf32>
    %49 = arith.mulf %48, %47 : vector<64x256xf32>
    %50 = arith.maximumf %47, %49 : vector<64x256xf32>
    %51 = arith.truncf %50 : vector<64x256xf32> to vector<64x256xbf16>
    %c0_26 = arith.constant 0 : index
    %c0_27 = arith.constant 0 : index
    %52 = vector.load %arg9[%c0_26, %c0_27] : memref<256x128xbf16, #tpu.memory_space<vmem>>, vector<256x128xbf16>
    %cst_28 = arith.constant dense<0.000000e+00> : vector<64x128xf32>
    %53 = tpu.matmul %51, %52, %cst_28 {dimension_numbers = #tpu.dot_dimension_numbers<[1], [0], [0], [1], [0, 0, 1, 1], [], []>} : vector<64x256xbf16>, vector<256x128xbf16>, vector<64x128xf32> -> vector<64x128xf32>
    %c0_29 = arith.constant 0 : index
    %c0_30 = arith.constant 0 : index
    %54 = vector.load %arg10[%c0_29, %c0_30] : memref<1x128xf32, #tpu.memory_space<vmem>>, vector<1x128xf32>
    %55 = vector.broadcast %54 : vector<1x128xf32> to vector<64x128xf32>
    %56 = arith.addf %53, %55 : vector<64x128xf32>
    %57 = arith.negf %56 : vector<64x128xf32>
    %58 = math.exp %57 : vector<64x128xf32>
    %cst_31 = arith.constant 1.000000e+00 : f32
    %59 = vector.broadcast %cst_31 : f32 to vector<64x128xf32>
    %60 = arith.addf %59, %58 : vector<64x128xf32>
    %61 = arith.divf %59, %60 : vector<64x128xf32>
    %c0_32 = arith.constant 0 : index
    %c0_33 = arith.constant 0 : index
    %62 = vector.load %arg11[%c0_32, %c0_33] : memref<64x128xf32, #tpu.memory_space<vmem>>, vector<64x128xf32>
    tpu.vector_store %arg11[%c0_32, %c0_33], %61 {strides = array<i32>} : memref<64x128xf32, #tpu.memory_space<vmem>>, vector<64x128xf32>,
    return
  }
}

</mosaic_0001>

<llo_original>
// kernel: _discriminator_forward.1
$region0: #{_discriminator_forward.1}
  #allocation0 [shape = 'u32[]', space=smem, size = 0x4, offset = 0x4, fixed_abs, tag = 'smem constant byte address 0x4 - core index']
  #allocation1 [shape = 'u32[144,128]{1,0:T(1,128)}', space=vmem, size = 0x12000, scoped, tag = 'internal scratch']
  %s0 = inlined_call_operand.vmem [shape: bf16[64,784], index: 0, kind: input, shape index: {}]
  %s1 = inlined_call_operand.vmem [shape: s32[64,1], index: 1, kind: input, shape index: {}]
  %s2 = inlined_call_operand.vmem [shape: bf16[784,512], index: 2, kind: input, shape index: {}]
  %s3 = inlined_call_operand.vmem [shape: bf16[16,512], index: 3, kind: input, shape index: {}]
  %s4 = inlined_call_operand.vmem [shape: f32[1,512], index: 4, kind: input, shape index: {}]
  %s5 = inlined_call_operand.vmem [shape: bf16[512,256], index: 5, kind: input, shape index: {}]
  %s6 = inlined_call_operand.vmem [shape: f32[1,256], index: 6, kind: input, shape index: {}]
  %s7 = inlined_call_operand.vmem [shape: f32[1,256], index: 7, kind: input, shape index: {}]
  %s8 = inlined_call_operand.vmem [shape: f32[1,256], index: 8, kind: input, shape index: {}]
  %s9 = inlined_call_operand.vmem [shape: bf16[256,128], index: 9, kind: input, shape index: {}]
  %s10 = inlined_call_operand.vmem [shape: f32[1,128], index: 10, kind: input, shape index: {}]
  %s11 = inlined_call_operand.vmem [shape: f32[64,128], index: 11, kind: output, shape index: {}]
  %s12 = sld [smem:[#allocation0]]
  $region54: #{_discriminator_forward.1} parent=0
    _
  %s14 = ssub.s32 1, %s12
  %s15 = scalar_select 0, %s14, %s12
  // Predicated region
  $region2: #{_discriminator_forward.1} parent=0 // pred_check
    _
  $region3: #{_discriminator_forward.1} parent=0 // pred_check_branch
    %17 = sbr.rel (0) target = $region5
  $region4: #{_discriminator_forward.1} parent=0 // pred_region
    _
  $region5: #{_discriminator_forward.1} parent=0 // pred_fallthru
    _
  // Predicated region
  $region6: #{_discriminator_forward.1} parent=0 // pred_check
    _
  $region7: #{_discriminator_forward.1} parent=0 // pred_check_branch
    %19 = sbr.rel (0) target = $region9
  $region8: #{_discriminator_forward.1} parent=0 // pred_region
    _
  $region9: #{_discriminator_forward.1} parent=0 // pred_fallthru
    _
  // Predicated region
  $region10: #{_discriminator_forward.1} parent=0 // pred_check
    _
  $region11: #{_discriminator_forward.1} parent=0 // pred_check_branch
    %21 = sbr.rel (0) target = $region13
  $region12: #{_discriminator_forward.1} parent=0 // pred_region
    _
  $region13: #{_discriminator_forward.1} parent=0 // pred_fallthru
    _
  // Predicated region
  $region14: #{_discriminator_forward.1} parent=0 // pred_check
    _
  $region15: #{_discriminator_forward.1} parent=0 // pred_check_branch
    %23 = sbr.rel (0) target = $region17
  $region16: #{_discriminator_forward.1} parent=0 // pred_region
    _
  $region17: #{_discriminator_forward.1} parent=0 // pred_fallthru
    _
  // Predicated region
  $region18: #{_discriminator_forward.1} parent=0 // pred_check
    _
  $region19: #{_discriminator_forward.1} parent=0 // pred_check_branch
    %25 = sbr.rel (0) target = $region21
  $region20: #{_discriminator_forward.1} parent=0 // pred_region
    _
  $region21: #{_discriminator_forward.1} parent=0 // pred_fallthru
    _
  // Predicated region
  $region22: #{_discriminator_forward.1} parent=0 // pred_check
    _
  $region23: #{_discriminator_forward.1} parent=0 // pred_check_branch
    %27 = sbr.rel (0) target = $region25
  $region24: #{_discriminator_forward.1} parent=0 // pred_region
    _
  $region25: #{_discriminator_forward.1} parent=0 // pred_fallthru
    _
  // Predicated region
  $region26: #{_discriminator_forward.1} parent=0 // pred_check
    _
  $region27: #{_discriminator_forward.1} parent=0 // pred_check_branch
    %29 = sbr.rel (0) target = $region29
  $region28: #{_discriminator_forward.1} parent=0 // pred_region
    _
  $region29: #{_discriminator_forward.1} parent=0 // pred_fallthru
    _
  // Predicated region
  $region30: #{_discriminator_forward.1} parent=0 // pred_check
    _
  $region31: #{_discriminator_forward.1} parent=0 // pred_check_branch
    %31 = sbr.rel (0) target = $region33
  $region32: #{_discriminator_forward.1} parent=0 // pred_region
    _
  $region33: #{_discriminator_forward.1} parent=0 // pred_fallthru
    _
  // Predicated region
  $region34: #{_discriminator_forward.1} parent=0 // pred_check
    _
  $region35: #{_discriminator_forward.1} parent=0 // pred_check_branch
    %33 = sbr.rel (0) target = $region37
  $region36: #{_discriminator_forward.1} parent=0 // pred_region
    _
  $region37: #{_discriminator_forward.1} parent=0 // pred_fallthru
    _
  // Predicated region
  $region38: #{_discriminator_forward.1} parent=0 // pred_check
    _
  $region39: #{_discriminator_forward.1} parent=0 // pred_check_branch
    %35 = sbr.rel (0) target = $region41
  $region40: #{_discriminator_forward.1} parent=0 // pred_region
    _
  $region41: #{_discriminator_forward.1} parent=0 // pred_fallthru
    _
  // Predicated region
  $region42: #{_discriminator_forward.1} parent=0 // pred_check
    _
  $region43: #{_discriminator_forward.1} parent=0 // pred_check_branch
    %37 = sbr.rel (0) target = $region45
  $region44: #{_discriminator_forward.1} parent=0 // pred_region
    _
  $region45: #{_discriminator_forward.1} parent=0 // pred_fallthru
    _
  %v39 = vlaneseq
  %v40 = vand.u32 %v39, 127
  %v41 = vld [vmem:[%s1] sm:$0xff]
  %v42 = vld [vmem:[%s1 + $0x8] sm:$0xff]
  %v43 = vld [vmem:[%s1 + $0x10] sm:$0xff]
  %v44 = vld [vmem:[%s1 + $0x18] sm:$0xff]
  %v45 = vld [vmem:[%s1 + $0x20] sm:$0xff]
  %v46 = vld [vmem:[%s1 + $0x28] sm:$0xff]
  %v47 = vld [vmem:[%s1 + $0x30] sm:$0xff]
  %v48 = vld [vmem:[%s1 + $0x38] sm:$0xff]
  %49 = vset.pattern.permute.xlu0 0
  %50 = vperm.xlu0 %49, %v41
  %v51 = vpop.permute.xlu0 %50
  %52 = vset.pattern.permute.xlu0 0
  %53 = vperm.xlu0 %52, %v42
  %v54 = vpop.permute.xlu0 %53
  %55 = vset.pattern.permute.xlu0 0
  %56 = vperm.xlu0 %55, %v43
  %v57 = vpop.permute.xlu0 %56
  %58 = vset.pattern.permute.xlu0 0
  %59 = vperm.xlu0 %58, %v44
  %v60 = vpop.permute.xlu0 %59
  %61 = vset.pattern.permute.xlu0 0
  %62 = vperm.xlu0 %61, %v45
  %v63 = vpop.permute.xlu0 %62
  %64 = vset.pattern.permute.xlu0 0
  %65 = vperm.xlu0 %64, %v46
  %v66 = vpop.permute.xlu0 %65
  %67 = vset.pattern.permute.xlu0 0
  %68 = vperm.xlu0 %67, %v47
  %v69 = vpop.permute.xlu0 %68
  %70 = vset.pattern.permute.xlu0 0
  %71 = vperm.xlu0 %70, %v48
  %v72 = vpop.permute.xlu0 %71
  %vm73 = vcmp.eq.s32.totalorder %v51, %v40
  %vm74 = vcmp.eq.s32.totalorder %v54, %v40
  %vm75 = vcmp.eq.s32.totalorder %v57, %v40
  %vm76 = vcmp.eq.s32.totalorder %v60, %v40
  %vm77 = vcmp.eq.s32.totalorder %v63, %v40
  %vm78 = vcmp.eq.s32.totalorder %v66, %v40
  %vm79 = vcmp.eq.s32.totalorder %v69, %v40
  %vm80 = vcmp.eq.s32.totalorder %v72, %v40
  %v81 = vsel %vm73, 1, 0
  %v82 = vsel %vm74, 1, 0
  %v83 = vsel %vm75, 1, 0
  %v84 = vsel %vm76, 1, 0
  %v85 = vsel %vm77, 1, 0
  %v86 = vsel %vm78, 1, 0
  %v87 = vsel %vm79, 1, 0
  %v88 = vsel %vm80, 1, 0
  %v89 = vcvt.s32.f32 %v81
  %v90 = vcvt.s32.f32 %v82
  %v91 = vcvt.s32.f32 %v83
  %v92 = vcvt.s32.f32 %v84
  %v93 = vcvt.s32.f32 %v85
  %v94 = vcvt.s32.f32 %v86
  %v95 = vcvt.s32.f32 %v87
  %v96 = vcvt.s32.f32 %v88
  %v97 = vpack.c.bf16 %v90, %v89
  %v98 = vpack.c.bf16 %v92, %v91
  %v99 = vpack.c.bf16 %v94, %v93
  %v100 = vpack.c.bf16 %v96, %v95
  %v101 = vld [vmem:[%s0] sm:$0xff]
  %v102 = vld [vmem:[%s0 + $0x8] sm:$0xff]
  %v103 = vld [vmem:[%s0 + $0x10] sm:$0xff]
  %v104 = vld [vmem:[%s0 + $0x18] sm:$0xf]
  %v105 = vld [vmem:[%s0 + $0x1c] sm:$0xff]
  %v106 = vld [vmem:[%s0 + $0x24] sm:$0xff]
  %v107 = vld [vmem:[%s0 + $0x2c] sm:$0xff]
  %v108 = vld [vmem:[%s0 + $0x34] sm:$0xf]
  %v109 = vld [vmem:[%s0 + $0x38] sm:$0xff]
  %v110 = vld [vmem:[%s0 + $0x40] sm:$0xff]
  %v111 = vld [vmem:[%s0 + $0x48] sm:$0xff]
  %v112 = vld [vmem:[%s0 + $0x50] sm:$0xf]
  %v113 = vld [vmem:[%s0 + $0x54] sm:$0xff]
  %v114 = vld [vmem:[%s0 + $0x5c] sm:$0xff]
  %v115 = vld [vmem:[%s0 + $0x64] sm:$0xff]
  %v116 = vld [vmem:[%s0 + $0x6c] sm:$0xf]
  %v117 = vld [vmem:[%s0 + $0x70] sm:$0xff]
  %v118 = vld [vmem:[%s0 + $0x78] sm:$0xff]
  %v119 = vld [vmem:[%s0 + $0x80] sm:$0xff]
  %v120 = vld [vmem:[%s0 + $0x88] sm:$0xf]
  %v121 = vld [vmem:[%s0 + $0x8c] sm:$0xff]
  %v122 = vld [vmem:[%s0 + $0x94] sm:$0xff]
  %v123 = vld [vmem:[%s0 + $0x9c] sm:$0xff]
  %v124 = vld [vmem:[%s0 + $0xa4] sm:$0xf]
  %v125 = vld [vmem:[%s0 + $0xa8] sm:$0xff]
  %v126 = vld [vmem:[%s0 + $0xb0] sm:$0xff]
  %v127 = vld [vmem:[%s0 + $0xb8] sm:$0xff]
  %v128 = vld [vmem:[%s0 + $0xc0] sm:$0xf]
  %v129 = vld [vmem:[%s0 + $0xc4] sm:$0xff]
  %v130 = vld [vmem:[%s0 + $0xcc] sm:$0xff]
  %v131 = vld [vmem:[%s0 + $0xd4] sm:$0xff]
  %v132 = vld [vmem:[%s0 + $0xdc] sm:$0xf]
  %v133 = vld [vmem:[%s2] sm:$0xff]
  %v134 = vld [vmem:[%s2 + $0x8] sm:$0xff]
  %v135 = vld [vmem:[%s2 + $0x10] sm:$0xff]
  %v136 = vld [vmem:[%s2 + $0x18] sm:$0xff]
  %v137 = vld [vmem:[%s2 + $0x20] sm:$0xff]
  %v138 = vld [vmem:[%s2 + $0x28] sm:$0xff]
  %v139 = vld [vmem:[%s2 + $0x30] sm:$0xff]
  %v140 = vld [vmem:[%s2 + $0x38] sm:$0xff]
  %v141 = vld [vmem:[%s2 + $0x40] sm:$0xff]
  %v142 = vld [vmem:[%s2 + $0x48] sm:$0xff]
  %v143 = vld [vmem:[%s2 + $0x50] sm:$0xff]
  %v144 = vld [vmem:[%s2 + $0x58] sm:$0xff]
  %v145 = vld [vmem:[%s2 + $0x60] sm:$0xff]
  %v146 = vld [vmem:[%s2 + $0x68] sm:$0xff]
  %v147 = vld [vmem:[%s2 + $0x70] sm:$0xff]
  %v148 = vld [vmem:[%s2 + $0x78] sm:$0xff]
  %v149 = vld [vmem:[%s2 + $0x80] sm:$0xff]
  %v150 = vld [vmem:[%s2 + $0x88] sm:$0xff]
  %v151 = vld [vmem:[%s2 + $0x90] sm:$0xff]
  %v152 = vld [vmem:[%s2 + $0x98] sm:$0xff]
  %v153 = vld [vmem:[%s2 + $0xa0] sm:$0xff]
  %v154 = vld [vmem:[%s2 + $0xa8] sm:$0xff]
  %v155 = vld [vmem:[%s2 + $0xb0] sm:$0xff]
  %v156 = vld [vmem:[%s2 + $0xb8] sm:$0xff]
  %v157 = vld [vmem:[%s2 + $0xc0] sm:$0xff]
  %v158 = vld [vmem:[%s2 + $0xc8] sm:$0xff]
  %v159 = vld [vmem:[%s2 + $0xd0] sm:$0xff]
  %v160 = vld [vmem:[%s2 + $0xd8] sm:$0xff]
  %v161 = vld [vmem:[%s2 + $0xe0] sm:$0xff]
  %v162 = vld [vmem:[%s2 + $0xe8] sm:$0xff]
  %v163 = vld [vmem:[%s2 + $0xf0] sm:$0xff]
  %v164 = vld [vmem:[%s2 + $0xf8] sm:$0xff]
  %v165 = vld [vmem:[%s2 + $0x100] sm:$0xff]
  %v166 = vld [vmem:[%s2 + $0x108] sm:$0xff]
  %v167 = vld [vmem:[%s2 + $0x110] sm:$0xff]
  %v168 = vld [vmem:[%s2 + $0x118] sm:$0xff]
  %v169 = vld [vmem:[%s2 + $0x120] sm:$0xff]
  %v170 = vld [vmem:[%s2 + $0x128] sm:$0xff]
  %v171 = vld [vmem:[%s2 + $0x130] sm:$0xff]
  %v172 = vld [vmem:[%s2 + $0x138] sm:$0xff]
  %v173 = vld [vmem:[%s2 + $0x140] sm:$0xff]
  %v174 = vld [vmem:[%s2 + $0x148] sm:$0xff]
  %v175 = vld [vmem:[%s2 + $0x150] sm:$0xff]
  %v176 = vld [vmem:[%s2 + $0x158] sm:$0xff]
  %v177 = vld [vmem:[%s2 + $0x160] sm:$0xff]
  %v178 = vld [vmem:[%s2 + $0x168] sm:$0xff]
  %v179 = vld [vmem:[%s2 + $0x170] sm:$0xff]
  %v180 = vld [vmem:[%s2 + $0x178] sm:$0xff]
  %v181 = vld [vmem:[%s2 + $0x180] sm:$0xff]
  %v182 = vld [vmem:[%s2 + $0x188] sm:$0xff]
  %v183 = vld [vmem:[%s2 + $0x190] sm:$0xff]
  %v184 = vld [vmem:[%s2 + $0x198] sm:$0xff]
  %v185 = vld [vmem:[%s2 + $0x1a0] sm:$0xff]
  %v186 = vld [vmem:[%s2 + $0x1a8] sm:$0xff]
  %v187 = vld [vmem:[%s2 + $0x1b0] sm:$0xff]
  %v188 = vld [vmem:[%s2 + $0x1b8] sm:$0xff]
  %v189 = vld [vmem:[%s2 + $0x1c0] sm:$0xff]
  %v190 = vld [vmem:[%s2 + $0x1c8] sm:$0xff]
  %v191 = vld [vmem:[%s2 + $0x1d0] sm:$0xff]
  %v192 = vld [vmem:[%s2 + $0x1d8] sm:$0xff]
  %v193 = vld [vmem:[%s2 + $0x1e0] sm:$0xff]
  %v194 = vld [vmem:[%s2 + $0x1e8] sm:$0xff]
  %v195 = vld [vmem:[%s2 + $0x1f0] sm:$0xff]
  %v196 = vld [vmem:[%s2 + $0x1f8] sm:$0xff]
  %v197 = vld [vmem:[%s2 + $0x200] sm:$0xff]
  %v198 = vld [vmem:[%s2 + $0x208] sm:$0xff]
  %v199 = vld [vmem:[%s2 + $0x210] sm:$0xff]
  %v200 = vld [vmem:[%s2 + $0x218] sm:$0xff]
  %v201 = vld [vmem:[%s2 + $0x220] sm:$0xff]
  %v202 = vld [vmem:[%s2 + $0x228] sm:$0xff]
  %v203 = vld [vmem:[%s2 + $0x230] sm:$0xff]
  %v204 = vld [vmem:[%s2 + $0x238] sm:$0xff]
  %v205 = vld [vmem:[%s2 + $0x240] sm:$0xff]
  %v206 = vld [vmem:[%s2 + $0x248] sm:$0xff]
  %v207 = vld [vmem:[%s2 + $0x250] sm:$0xff]
  %v208 = vld [vmem:[%s2 + $0x258] sm:$0xff]
  %v209 = vld [vmem:[%s2 + $0x260] sm:$0xff]
  %v210 = vld [vmem:[%s2 + $0x268] sm:$0xff]
  %v211 = vld [vmem:[%s2 + $0x270] sm:$0xff]
  %v212 = vld [vmem:[%s2 + $0x278] sm:$0xff]
  %v213 = vld [vmem:[%s2 + $0x280] sm:$0xff]
  %v214 = vld [vmem:[%s2 + $0x288] sm:$0xff]
  %v215 = vld [vmem:[%s2 + $0x290] sm:$0xff]
  %v216 = vld [vmem:[%s2 + $0x298] sm:$0xff]
  %v217 = vld [vmem:[%s2 + $0x2a0] sm:$0xff]
  %v218 = vld [vmem:[%s2 + $0x2a8] sm:$0xff]
  %v219 = vld [vmem:[%s2 + $0x2b0] sm:$0xff]
  %v220 = vld [vmem:[%s2 + $0x2b8] sm:$0xff]
  %v221 = vld [vmem:[%s2 + $0x2c0] sm:$0xff]
  %v222 = vld [vmem:[%s2 + $0x2c8] sm:$0xff]
  %v223 = vld [vmem:[%s2 + $0x2d0] sm:$0xff]
  %v224 = vld [vmem:[%s2 + $0x2d8] sm:$0xff]
  %v225 = vld [vmem:[%s2 + $0x2e0] sm:$0xff]
  %v226 = vld [vmem:[%s2 + $0x2e8] sm:$0xff]
  %v227 = vld [vmem:[%s2 + $0x2f0] sm:$0xff]
  %v228 = vld [vmem:[%s2 + $0x2f8] sm:$0xff]
  %v229 = vld [vmem:[%s2 + $0x300] sm:$0xff]
  %v230 = vld [vmem:[%s2 + $0x308] sm:$0xff]
  %v231 = vld [vmem:[%s2 + $0x310] sm:$0xff]
  %v232 = vld [vmem:[%s2 + $0x318] sm:$0xff]
  %v233 = vld [vmem:[%s2 + $0x320] sm:$0xff]
  %v234 = vld [vmem:[%s2 + $0x328] sm:$0xff]
  %v235 = vld [vmem:[%s2 + $0x330] sm:$0xff]
  %v236 = vld [vmem:[%s2 + $0x338] sm:$0xff]
  %v237 = vld [vmem:[%s2 + $0x340] sm:$0xff]
  %v238 = vld [vmem:[%s2 + $0x348] sm:$0xff]
  %v239 = vld [vmem:[%s2 + $0x350] sm:$0xff]
  %v240 = vld [vmem:[%s2 + $0x358] sm:$0xff]
  %v241 = vld [vmem:[%s2 + $0x360] sm:$0xff]
  %v242 = vld [vmem:[%s2 + $0x368] sm:$0xff]
  %v243 = vld [vmem:[%s2 + $0x370] sm:$0xff]
  %v244 = vld [vmem:[%s2 + $0x378] sm:$0xff]
  %v245 = vld [vmem:[%s2 + $0x380] sm:$0xff]
  %v246 = vld [vmem:[%s2 + $0x388] sm:$0xff]
  %v247 = vld [vmem:[%s2 + $0x390] sm:$0xff]
  %v248 = vld [vmem:[%s2 + $0x398] sm:$0xff]
  %v249 = vld [vmem:[%s2 + $0x3a0] sm:$0xff]
  %v250 = vld [vmem:[%s2 + $0x3a8] sm:$0xff]
  %v251 = vld [vmem:[%s2 + $0x3b0] sm:$0xff]
  %v252 = vld [vmem:[%s2 + $0x3b8] sm:$0xff]
  %v253 = vld [vmem:[%s2 + $0x3c0] sm:$0xff]
  %v254 = vld [vmem:[%s2 + $0x3c8] sm:$0xff]
  %v255 = vld [vmem:[%s2 + $0x3d0] sm:$0xff]
  %v256 = vld [vmem:[%s2 + $0x3d8] sm:$0xff]
  %v257 = vld [vmem:[%s2 + $0x3e0] sm:$0xff]
  %v258 = vld [vmem:[%s2 + $0x3e8] sm:$0xff]
  %v259 = vld [vmem:[%s2 + $0x3f0] sm:$0xff]
  %v260 = vld [vmem:[%s2 + $0x3f8] sm:$0xff]
  %v261 = vld [vmem:[%s2 + $0x400] sm:$0xff]
  %v262 = vld [vmem:[%s2 + $0x408] sm:$0xff]
  %v263 = vld [vmem:[%s2 + $0x410] sm:$0xff]
  %v264 = vld [vmem:[%s2 + $0x418] sm:$0xff]
  %v265 = vld [vmem:[%s2 + $0x420] sm:$0xff]
  %v266 = vld [vmem:[%s2 + $0x428] sm:$0xff]
  %v267 = vld [vmem:[%s2 + $0x430] sm:$0xff]
  %v268 = vld [vmem:[%s2 + $0x438] sm:$0xff]
  %v269 = vld [vmem:[%s2 + $0x440] sm:$0xff]
  %v270 = vld [vmem:[%s2 + $0x448] sm:$0xff]
  %v271 = vld [vmem:[%s2 + $0x450] sm:$0xff]
  %v272 = vld [vmem:[%s2 + $0x458] sm:$0xff]
  %v273 = vld [vmem:[%s2 + $0x460] sm:$0xff]
  %v274 = vld [vmem:[%s2 + $0x468] sm:$0xff]
  %v275 = vld [vmem:[%s2 + $0x470] sm:$0xff]
  %v276 = vld [vmem:[%s2 + $0x478] sm:$0xff]
  %v277 = vld [vmem:[%s2 + $0x480] sm:$0xff]
  %v278 = vld [vmem:[%s2 + $0x488] sm:$0xff]
  %v279 = vld [vmem:[%s2 + $0x490] sm:$0xff]
  %v280 = vld [vmem:[%s2 + $0x498] sm:$0xff]
  %v281 = vld [vmem:[%s2 + $0x4a0] sm:$0xff]
  %v282 = vld [vmem:[%s2 + $0x4a8] sm:$0xff]
  %v283 = vld [vmem:[%s2 + $0x4b0] sm:$0xff]
  %v284 = vld [vmem:[%s2 + $0x4b8] sm:$0xff]
  %v285 = vld [vmem:[%s2 + $0x4c0] sm:$0xff]
  %v286 = vld [vmem:[%s2 + $0x4c8] sm:$0xff]
  %v287 = vld [vmem:[%s2 + $0x4d0] sm:$0xff]
  %v288 = vld [vmem:[%s2 + $0x4d8] sm:$0xff]
  %v289 = vld [vmem:[%s2 + $0x4e0] sm:$0xff]
  %v290 = vld [vmem:[%s2 + $0x4e8] sm:$0xff]
  %v291 = vld [vmem:[%s2 + $0x4f0] sm:$0xff]
  %v292 = vld [vmem:[%s2 + $0x4f8] sm:$0xff]
  %v293 = vld [vmem:[%s2 + $0x500] sm:$0xff]
  %v294 = vld [vmem:[%s2 + $0x508] sm:$0xff]
  %v295 = vld [vmem:[%s2 + $0x510] sm:$0xff]
  %v296 = vld [vmem:[%s2 + $0x518] sm:$0xff]
  %v297 = vld [vmem:[%s2 + $0x520] sm:$0xff]
  %v298 = vld [vmem:[%s2 + $0x528] sm:$0xff]
  %v299 = vld [vmem:[%s2 + $0x530] sm:$0xff]
  %v300 = vld [vmem:[%s2 + $0x538] sm:$0xff]
  %v301 = vld [vmem:[%s2 + $0x540] sm:$0xff]
  %v302 = vld [vmem:[%s2 + $0x548] sm:$0xff]
  %v303 = vld [vmem:[%s2 + $0x550] sm:$0xff]
  %v304 = vld [vmem:[%s2 + $0x558] sm:$0xff]
  %v305 = vld [vmem:[%s2 + $0x560] sm:$0xff]
  %v306 = vld [vmem:[%s2 + $0x568] sm:$0xff]
  %v307 = vld [vmem:[%s2 + $0x570] sm:$0xff]
  %v308 = vld [vmem:[%s2 + $0x578] sm:$0xff]
  %v309 = vld [vmem:[%s2 + $0x580] sm:$0xff]
  %v310 = vld [vmem:[%s2 + $0x588] sm:$0xff]
  %v311 = vld [vmem:[%s2 + $0x590] sm:$0xff]
  %v312 = vld [vmem:[%s2 + $0x598] sm:$0xff]
  %v313 = vld [vmem:[%s2 + $0x5a0] sm:$0xff]
  %v314 = vld [vmem:[%s2 + $0x5a8] sm:$0xff]
  %v315 = vld [vmem:[%s2 + $0x5b0] sm:$0xff]
  %v316 = vld [vmem:[%s2 + $0x5b8] sm:$0xff]
  %v317 = vld [vmem:[%s2 + $0x5c0] sm:$0xff]
  %v318 = vld [vmem:[%s2 + $0x5c8] sm:$0xff]
  %v319 = vld [vmem:[%s2 + $0x5d0] sm:$0xff]
  %v320 = vld [vmem:[%s2 + $0x5d8] sm:$0xff]
  %v321 = vld [vmem:[%s2 + $0x5e0] sm:$0xff]
  %v322 = vld [vmem:[%s2 + $0x5e8] sm:$0xff]
  %v323 = vld [vmem:[%s2 + $0x5f0] sm:$0xff]
  %v324 = vld [vmem:[%s2 + $0x5f8] sm:$0xff]
  %v325 = vld [vmem:[%s2 + $0x600] sm:$0xff]
  %v326 = vld [vmem:[%s2 + $0x608] sm:$0xff]
  %v327 = vld [vmem:[%s2 + $0x610] sm:$0xff]
  %v328 = vld [vmem:[%s2 + $0x618] sm:$0xff]
  %v329 = vld [vmem:[%s3] sm:$0xff]
  %v330 = vld [vmem:[%s3 + $0x8] sm:$0xff]
  %v331 = vld [vmem:[%s3 + $0x10] sm:$0xff]
  %v332 = vld [vmem:[%s3 + $0x18] sm:$0xff]
  %v337 = vunpack.c.l.b16 %v329
  %v338 = vunpack.c.h.b16 %v329
  %v339 = vunpack.c.l.b16 %v330
  %v340 = vunpack.c.h.b16 %v330
  %v341 = vunpack.c.l.b16 %v331
  %v342 = vunpack.c.h.b16 %v331
  %v343 = vunpack.c.l.b16 %v332
  %v344 = vunpack.c.h.b16 %v332
  %v345 = vpack.c.b16 %v341, %v337
  %v346 = vpack.c.b16 %v342, %v338
  %v347 = vpack.c.b16 %v343, %v339
  %v348 = vpack.c.b16 %v344, %v340
  %vm353 = vcmask 130048
  %v355 = vsel %vm353, %v97, 0
  %v358 = vsel %vm353, %v98, 0
  %v361 = vsel %vm353, %v99, 0
  %v364 = vsel %vm353, %v100, 0
  %366 = vmatprep.subr.bf16.mxu0 0
  %367 = vmatpush1.bf16.msra.mxu0 0
  %368 = vmatprep.subr.bf16.mxu0 0
  %369 = vmatpush1.bf16.msra.mxu0 0
  %370 = vmatprep.subr.bf16.mxu0 0
  %371 = vmatpush1.bf16.msra.mxu0 0
  %372 = vmatprep.subr.bf16.mxu0 0
  %373 = vmatpush1.bf16.msra.mxu0 0
  %374 = vmatprep.subr.bf16.mxu0 0
  %375 = vmatpush1.bf16.msra.mxu0 0
  %376 = vmatprep.subr.bf16.mxu0 0
  %377 = vmatpush1.bf16.msra.mxu0 0
  %378 = vmatprep.subr.bf16.mxu0 0
  %379 = vmatpush1.bf16.msra.mxu0 0
  %380 = vmatprep.subr.bf16.mxu0 %v346
  %381 = vmatpush1.bf16.msra.mxu0 %v345
  %382 = vmatprep.subr.bf16.mxu0 0
  %383 = vmatpush2.bf16.msra.mxu0 0
  %384 = vmatprep.subr.bf16.mxu0 0
  %385 = vmatpush2.bf16.msra.mxu0 0
  %386 = vmatprep.subr.bf16.mxu0 0
  %387 = vmatpush2.bf16.msra.mxu0 0
  %388 = vmatprep.subr.bf16.mxu0 0
  %389 = vmatpush2.bf16.msra.mxu0 0
  %390 = vmatprep.subr.bf16.mxu0 0
  %391 = vmatpush2.bf16.msra.mxu0 0
  %392 = vmatprep.subr.bf16.mxu0 0
  %393 = vmatpush2.bf16.msra.mxu0 0
  %394 = vmatprep.subr.bf16.mxu0 0
  %395 = vmatpush2.bf16.msra.mxu0 0
  %396 = vmatprep.subr.bf16.mxu0 0
  %397 = vmatpush2.bf16.msra.mxu0 0
  %398 = vmatprep.mubr.bf16.mxu0 0
  %399 = vmatmul.mubr.bf16.gmra.mxu0 %v355
  %v400 = vpop.f32.mrf.mxu0
  %v401 = vadd.f32 0.0, %v400
  %v402 = vpop.f32.mrf.mxu0
  %v403 = vadd.f32 0.0, %v402
  %v404 = vpop.f32.mrf.mxu0
  %v405 = vadd.f32 0.0, %v404
  %v406 = vpop.f32.mrf.mxu0
  %v407 = vadd.f32 0.0, %v406
  %408 = vmatprep.mubr.bf16.mxu0 0
  %409 = vmatmul.mubr.bf16.gmra.mxu0 %v358
  %v410 = vpop.f32.mrf.mxu0
  %v411 = vadd.f32 0.0, %v410
  %v412 = vpop.f32.mrf.mxu0
  %v413 = vadd.f32 0.0, %v412
  %v414 = vpop.f32.mrf.mxu0
  %v415 = vadd.f32 0.0, %v414
  %v416 = vpop.f32.mrf.mxu0
  %v417 = vadd.f32 0.0, %v416
  %418 = vmatprep.mubr.bf16.mxu0 0
  %419 = vmatmul.mubr.bf16.gmra.mxu0 %v361
  %v420 = vpop.f32.mrf.mxu0
  %v421 = vadd.f32 0.0, %v420
  %v422 = vpop.f32.mrf.mxu0
  %v423 = vadd.f32 0.0, %v422
  %v424 = vpop.f32.mrf.mxu0
  %v425 = vadd.f32 0.0, %v424
  %v426 = vpop.f32.mrf.mxu0
  %v427 = vadd.f32 0.0, %v426
  %428 = vmatprep.mubr.bf16.mxu0 0
  %429 = vmatmul.mubr.bf16.gmra.mxu0 %v364
  %v430 = vpop.f32.mrf.mxu0
  %v431 = vadd.f32 0.0, %v430
  %v432 = vpop.f32.mrf.mxu0
  %v433 = vadd.f32 0.0, %v432
  %v434 = vpop.f32.mrf.mxu0
  %v435 = vadd.f32 0.0, %v434
  %v436 = vpop.f32.mrf.mxu0
  %v437 = vadd.f32 0.0, %v436
  %438 = vdwg.mxu0
  %439 = vmatprep.subr.bf16.mxu0 0
  %440 = vmatpush1.bf16.msra.mxu0 0
  %441 = vmatprep.subr.bf16.mxu0 0
  %442 = vmatpush1.bf16.msra.mxu0 0
  %443 = vmatprep.subr.bf16.mxu0 0
  %444 = vmatpush1.bf16.msra.mxu0 0
  %445 = vmatprep.subr.bf16.mxu0 0
  %446 = vmatpush1.bf16.msra.mxu0 0
  %447 = vmatprep.subr.bf16.mxu0 0
  %448 = vmatpush1.bf16.msra.mxu0 0
  %449 = vmatprep.subr.bf16.mxu0 0
  %450 = vmatpush1.bf16.msra.mxu0 0
  %451 = vmatprep.subr.bf16.mxu0 0
  %452 = vmatpush1.bf16.msra.mxu0 0
  %453 = vmatprep.subr.bf16.mxu0 %v348
  %454 = vmatpush1.bf16.msra.mxu0 %v347
  %455 = vmatprep.subr.bf16.mxu0 0
  %456 = vmatpush2.bf16.msra.mxu0 0
  %457 = vmatprep.subr.bf16.mxu0 0
  %458 = vmatpush2.bf16.msra.mxu0 0
  %459 = vmatprep.subr.bf16.mxu0 0
  %460 = vmatpush2.bf16.msra.mxu0 0
  %461 = vmatprep.subr.bf16.mxu0 0
  %462 = vmatpush2.bf16.msra.mxu0 0
  %463 = vmatprep.subr.bf16.mxu0 0
  %464 = vmatpush2.bf16.msra.mxu0 0
  %465 = vmatprep.subr.bf16.mxu0 0
  %466 = vmatpush2.bf16.msra.mxu0 0
  %467 = vmatprep.subr.bf16.mxu0 0
  %468 = vmatpush2.bf16.msra.mxu0 0
  %469 = vmatprep.subr.bf16.mxu0 0
  %470 = vmatpush2.bf16.msra.mxu0 0
  %471 = vmatprep.mubr.bf16.mxu0 0
  %472 = vmatmul.mubr.bf16.gmra.mxu0 %v355
  %v473 = vpop.f32.mrf.mxu0
  %v474 = vadd.f32 0.0, %v473
  %v475 = vpop.f32.mrf.mxu0
  %v476 = vadd.f32 0.0, %v475
  %v477 = vpop.f32.mrf.mxu0
  %v478 = vadd.f32 0.0, %v477
  %v479 = vpop.f32.mrf.mxu0
  %v480 = vadd.f32 0.0, %v479
  %481 = vmatprep.mubr.bf16.mxu0 0
  %482 = vmatmul.mubr.bf16.gmra.mxu0 %v358
  %v483 = vpop.f32.mrf.mxu0
  %v484 = vadd.f32 0.0, %v483
  %v485 = vpop.f32.mrf.mxu0
  %v486 = vadd.f32 0.0, %v485
  %v487 = vpop.f32.mrf.mxu0
  %v488 = vadd.f32 0.0, %v487
  %v489 = vpop.f32.mrf.mxu0
  %v490 = vadd.f32 0.0, %v489
  %491 = vmatprep.mubr.bf16.mxu0 0
  %492 = vmatmul.mubr.bf16.gmra.mxu0 %v361
  %v493 = vpop.f32.mrf.mxu0
  %v494 = vadd.f32 0.0, %v493
  %v495 = vpop.f32.mrf.mxu0
  %v496 = vadd.f32 0.0, %v495
  %v497 = vpop.f32.mrf.mxu0
  %v498 = vadd.f32 0.0, %v497
  %v499 = vpop.f32.mrf.mxu0
  %v500 = vadd.f32 0.0, %v499
  %501 = vmatprep.mubr.bf16.mxu0 0
  %502 = vmatmul.mubr.bf16.gmra.mxu0 %v364
  %v503 = vpop.f32.mrf.mxu0
  %v504 = vadd.f32 0.0, %v503
  %v505 = vpop.f32.mrf.mxu0
  %v506 = vadd.f32 0.0, %v505
  %v507 = vpop.f32.mrf.mxu0
  %v508 = vadd.f32 0.0, %v507
  %v509 = vpop.f32.mrf.mxu0
  %v510 = vadd.f32 0.0, %v509
  %511 = vdwg.mxu0
  %v544 = vunpack.c.l.b16 %v101
  %v545 = vunpack.c.h.b16 %v101
  %v546 = vunpack.c.l.b16 %v102
  %v547 = vunpack.c.h.b16 %v102
  %v548 = vunpack.c.l.b16 %v103
  %v549 = vunpack.c.h.b16 %v103
  %v550 = vunpack.c.l.b16 %v104
  %v551 = vunpack.c.l.b16 %v105
  %v552 = vunpack.c.h.b16 %v105
  %v553 = vunpack.c.l.b16 %v106
  %v554 = vunpack.c.h.b16 %v106
  %v555 = vunpack.c.l.b16 %v107
  %v556 = vunpack.c.h.b16 %v107
  %v557 = vunpack.c.l.b16 %v108
  %v558 = vunpack.c.l.b16 %v109
  %v559 = vunpack.c.h.b16 %v109
  %v560 = vunpack.c.l.b16 %v110
  %v561 = vunpack.c.h.b16 %v110
  %v562 = vunpack.c.l.b16 %v111
  %v563 = vunpack.c.h.b16 %v111
  %v564 = vunpack.c.l.b16 %v112
  %v565 = vunpack.c.l.b16 %v113
  %v566 = vunpack.c.h.b16 %v113
  %v567 = vunpack.c.l.b16 %v114
  %v568 = vunpack.c.h.b16 %v114
  %v569 = vunpack.c.l.b16 %v115
  %v570 = vunpack.c.h.b16 %v115
  %v571 = vunpack.c.l.b16 %v116
  %v572 = vunpack.c.l.b16 %v117
  %v573 = vunpack.c.h.b16 %v117
  %v574 = vunpack.c.l.b16 %v118
  %v575 = vunpack.c.h.b16 %v118
  %v576 = vunpack.c.l.b16 %v119
  %v577 = vunpack.c.h.b16 %v119
  %v578 = vunpack.c.l.b16 %v120
  %v579 = vunpack.c.l.b16 %v121
  %v580 = vunpack.c.h.b16 %v121
  %v581 = vunpack.c.l.b16 %v122
  %v582 = vunpack.c.h.b16 %v122
  %v583 = vunpack.c.l.b16 %v123
  %v584 = vunpack.c.h.b16 %v123
  %v585 = vunpack.c.l.b16 %v124
  %v586 = vunpack.c.l.b16 %v125
  %v587 = vunpack.c.h.b16 %v125
  %v588 = vunpack.c.l.b16 %v126
  %v589 = vunpack.c.h.b16 %v126
  %v590 = vunpack.c.l.b16 %v127
  %v591 = vunpack.c.h.b16 %v127
  %v592 = vunpack.c.l.b16 %v128
  %v593 = vunpack.c.l.b16 %v129
  %v594 = vunpack.c.h.b16 %v129
  %v595 = vunpack.c.l.b16 %v130
  %v596 = vunpack.c.h.b16 %v130
  %v597 = vunpack.c.l.b16 %v131
  %v598 = vunpack.c.h.b16 %v131
  %v599 = vunpack.c.l.b16 %v132
  %v600 = vpack.c.b16 %v551, %v544
  %v601 = vpack.c.b16 %v552, %v545
  %v602 = vpack.c.b16 %v553, %v546
  %v603 = vpack.c.b16 %v554, %v547
  %v604 = vpack.c.b16 %v555, %v548
  %v605 = vpack.c.b16 %v556, %v549
  %v606 = vpack.c.b16 %v557, %v550
  %v607 = vpack.c.b16 %v565, %v558
  %v608 = vpack.c.b16 %v566, %v559
  %v609 = vpack.c.b16 %v567, %v560
  %v610 = vpack.c.b16 %v568, %v561
  %v611 = vpack.c.b16 %v569, %v562
  %v612 = vpack.c.b16 %v570, %v563
  %v613 = vpack.c.b16 %v571, %v564
  %v614 = vpack.c.b16 %v579, %v572
  %v615 = vpack.c.b16 %v580, %v573
  %v616 = vpack.c.b16 %v581, %v574
  %v617 = vpack.c.b16 %v582, %v575
  %v618 = vpack.c.b16 %v583, %v576
  %v619 = vpack.c.b16 %v584, %v577
  %v620 = vpack.c.b16 %v585, %v578
  %v621 = vpack.c.b16 %v593, %v586
  %v622 = vpack.c.b16 %v594, %v587
  %v623 = vpack.c.b16 %v595, %v588
  %v624 = vpack.c.b16 %v596, %v589
  %v625 = vpack.c.b16 %v597, %v590
  %v626 = vpack.c.b16 %v598, %v591
  %v627 = vpack.c.b16 %v599, %v592
  %v848 = vunpack.c.l.b16 %v133
  %v849 = vunpack.c.h.b16 %v133
  %v850 = vunpack.c.l.b16 %v134
  %v851 = vunpack.c.h.b16 %v134
  %v852 = vunpack.c.l.b16 %v135
  %v853 = vunpack.c.h.b16 %v135
  %v854 = vunpack.c.l.b16 %v136
  %v855 = vunpack.c.h.b16 %v136
  %v856 = vunpack.c.l.b16 %v137
  %v857 = vunpack.c.h.b16 %v137
  %v858 = vunpack.c.l.b16 %v138
  %v859 = vunpack.c.h.b16 %v138
  %v860 = vunpack.c.l.b16 %v139
  %v861 = vunpack.c.h.b16 %v139
  %v862 = vunpack.c.l.b16 %v140
  %v863 = vunpack.c.h.b16 %v140
  %v864 = vunpack.c.l.b16 %v141
  %v865 = vunpack.c.h.b16 %v141
  %v866 = vunpack.c.l.b16 %v142
  %v867 = vunpack.c.h.b16 %v142
  %v868 = vunpack.c.l.b16 %v143
  %v869 = vunpack.c.h.b16 %v143
  %v870 = vunpack.c.l.b16 %v144
  %v871 = vunpack.c.h.b16 %v144
  %v872 = vunpack.c.l.b16 %v145
  %v873 = vunpack.c.h.b16 %v145
  %v874 = vunpack.c.l.b16 %v146
  %v875 = vunpack.c.h.b16 %v146
  %v876 = vunpack.c.l.b16 %v147
  %v877 = vunpack.c.h.b16 %v147
  %v878 = vunpack.c.l.b16 %v148
  %v879 = vunpack.c.h.b16 %v148
  %v880 = vunpack.c.l.b16 %v149
  %v881 = vunpack.c.h.b16 %v149
  %v882 = vunpack.c.l.b16 %v150
  %v883 = vunpack.c.h.b16 %v150
  %v884 = vunpack.c.l.b16 %v151
  %v885 = vunpack.c.h.b16 %v151
  %v886 = vunpack.c.l.b16 %v152
  %v887 = vunpack.c.h.b16 %v152
  %v888 = vunpack.c.l.b16 %v153
  %v889 = vunpack.c.h.b16 %v153
  %v890 = vunpack.c.l.b16 %v154
  %v891 = vunpack.c.h.b16 %v154
  %v892 = vunpack.c.l.b16 %v155
  %v893 = vunpack.c.h.b16 %v155
  %v894 = vunpack.c.l.b16 %v156
  %v895 = vunpack.c.h.b16 %v156
  %v896 = vunpack.c.l.b16 %v157
  %v897 = vunpack.c.h.b16 %v157
  %v898 = vunpack.c.l.b16 %v158
  %v899 = vunpack.c.h.b16 %v158
  %v900 = vunpack.c.l.b16 %v159
  %v901 = vunpack.c.h.b16 %v159
  %v902 = vunpack.c.l.b16 %v160
  %v903 = vunpack.c.h.b16 %v160
  %v904 = vunpack.c.l.b16 %v161
  %v905 = vunpack.c.h.b16 %v161
  %v906 = vunpack.c.l.b16 %v162
  %v907 = vunpack.c.h.b16 %v162
  %v908 = vunpack.c.l.b16 %v163
  %v909 = vunpack.c.h.b16 %v163
  %v910 = vunpack.c.l.b16 %v164
  %v911 = vunpack.c.h.b16 %v164
  %v912 = vunpack.c.l.b16 %v165
  %v913 = vunpack.c.h.b16 %v165
  %v914 = vunpack.c.l.b16 %v166
  %v915 = vunpack.c.h.b16 %v166
  %v916 = vunpack.c.l.b16 %v167
  %v917 = vunpack.c.h.b16 %v167
  %v918 = vunpack.c.l.b16 %v168
  %v919 = vunpack.c.h.b16 %v168
  %v920 = vunpack.c.l.b16 %v169
  %v921 = vunpack.c.h.b16 %v169
  %v922 = vunpack.c.l.b16 %v170
  %v923 = vunpack.c.h.b16 %v170
  %v924 = vunpack.c.l.b16 %v171
  %v925 = vunpack.c.h.b16 %v171
  %v926 = vunpack.c.l.b16 %v172
  %v927 = vunpack.c.h.b16 %v172
  %v928 = vunpack.c.l.b16 %v173
  %v929 = vunpack.c.h.b16 %v173
  %v930 = vunpack.c.l.b16 %v174
  %v931 = vunpack.c.h.b16 %v174
  %v932 = vunpack.c.l.b16 %v175
  %v933 = vunpack.c.h.b16 %v175
  %v934 = vunpack.c.l.b16 %v176
  %v935 = vunpack.c.h.b16 %v176
  %v936 = vunpack.c.l.b16 %v177
  %v937 = vunpack.c.h.b16 %v177
  %v938 = vunpack.c.l.b16 %v178
  %v939 = vunpack.c.h.b16 %v178
  %v940 = vunpack.c.l.b16 %v179
  %v941 = vunpack.c.h.b16 %v179
  %v942 = vunpack.c.l.b16 %v180
  %v943 = vunpack.c.h.b16 %v180
  %v944 = vunpack.c.l.b16 %v181
  %v945 = vunpack.c.h.b16 %v181
  %v946 = vunpack.c.l.b16 %v182
  %v947 = vunpack.c.h.b16 %v182
  %v948 = vunpack.c.l.b16 %v183
  %v949 = vunpack.c.h.b16 %v183
  %v950 = vunpack.c.l.b16 %v184
  %v951 = vunpack.c.h.b16 %v184
  %v952 = vunpack.c.l.b16 %v185
  %v953 = vunpack.c.h.b16 %v185
  %v954 = vunpack.c.l.b16 %v186
  %v955 = vunpack.c.h.b16 %v186
  %v956 = vunpack.c.l.b16 %v187
  %v957 = vunpack.c.h.b16 %v187
  %v958 = vunpack.c.l.b16 %v188
  %v959 = vunpack.c.h.b16 %v188
  %v960 = vunpack.c.l.b16 %v189
  %v961 = vunpack.c.h.b16 %v189
  %v962 = vunpack.c.l.b16 %v190
  %v963 = vunpack.c.h.b16 %v190
  %v964 = vunpack.c.l.b16 %v191
  %v965 = vunpack.c.h.b16 %v191
  %v966 = vunpack.c.l.b16 %v192
  %v967 = vunpack.c.h.b16 %v192
  %v968 = vunpack.c.l.b16 %v193
  %v969 = vunpack.c.h.b16 %v193
  %v970 = vunpack.c.l.b16 %v194
  %v971 = vunpack.c.h.b16 %v194
  %v972 = vunpack.c.l.b16 %v195
  %v973 = vunpack.c.h.b16 %v195
  %v974 = vunpack.c.l.b16 %v196
  %v975 = vunpack.c.h.b16 %v196
  %v976 = vunpack.c.l.b16 %v197
  %v977 = vunpack.c.h.b16 %v197
  %v978 = vunpack.c.l.b16 %v198
  %v979 = vunpack.c.h.b16 %v198
  %v980 = vunpack.c.l.b16 %v199
  %v981 = vunpack.c.h.b16 %v199
  %v982 = vunpack.c.l.b16 %v200
  %v983 = vunpack.c.h.b16 %v200
  %v984 = vunpack.c.l.b16 %v201
  %v985 = vunpack.c.h.b16 %v201
  %v986 = vunpack.c.l.b16 %v202
  %v987 = vunpack.c.h.b16 %v202
  %v988 = vunpack.c.l.b16 %v203
  %v989 = vunpack.c.h.b16 %v203
  %v990 = vunpack.c.l.b16 %v204
  %v991 = vunpack.c.h.b16 %v204
  %v992 = vunpack.c.l.b16 %v205
  %v993 = vunpack.c.h.b16 %v205
  %v994 = vunpack.c.l.b16 %v206
  %v995 = vunpack.c.h.b16 %v206
  %v996 = vunpack.c.l.b16 %v207
  %v997 = vunpack.c.h.b16 %v207
  %v998 = vunpack.c.l.b16 %v208
  %v999 = vunpack.c.h.b16 %v208
  %v1000 = vunpack.c.l.b16 %v209
  %v1001 = vunpack.c.h.b16 %v209
  %v1002 = vunpack.c.l.b16 %v210
  %v1003 = vunpack.c.h.b16 %v210
  %v1004 = vunpack.c.l.b16 %v211
  %v1005 = vunpack.c.h.b16 %v211
  %v1006 = vunpack.c.l.b16 %v212
  %v1007 = vunpack.c.h.b16 %v212
  %v1008 = vunpack.c.l.b16 %v213
  %v1009 = vunpack.c.h.b16 %v213
  %v1010 = vunpack.c.l.b16 %v214
  %v1011 = vunpack.c.h.b16 %v214
  %v1012 = vunpack.c.l.b16 %v215
  %v1013 = vunpack.c.h.b16 %v215
  %v1014 = vunpack.c.l.b16 %v216
  %v1015 = vunpack.c.h.b16 %v216
  %v1016 = vunpack.c.l.b16 %v217
  %v1017 = vunpack.c.h.b16 %v217
  %v1018 = vunpack.c.l.b16 %v218
  %v1019 = vunpack.c.h.b16 %v218
  %v1020 = vunpack.c.l.b16 %v219
  %v1021 = vunpack.c.h.b16 %v219
  %v1022 = vunpack.c.l.b16 %v220
  %v1023 = vunpack.c.h.b16 %v220
  %v1024 = vunpack.c.l.b16 %v221
  %v1025 = vunpack.c.h.b16 %v221
  %v1026 = vunpack.c.l.b16 %v222
  %v1027 = vunpack.c.h.b16 %v222
  %v1028 = vunpack.c.l.b16 %v223
  %v1029 = vunpack.c.h.b16 %v223
  %v1030 = vunpack.c.l.b16 %v224
  %v1031 = vunpack.c.h.b16 %v224
  %v1032 = vunpack.c.l.b16 %v225
  %v1033 = vunpack.c.h.b16 %v225
  %v1034 = vunpack.c.l.b16 %v226
  %v1035 = vunpack.c.h.b16 %v226
  %v1036 = vunpack.c.l.b16 %v227
  %v1037 = vunpack.c.h.b16 %v227
  %v1038 = vunpack.c.l.b16 %v228
  %v1039 = vunpack.c.h.b16 %v228
  %v1040 = vunpack.c.l.b16 %v229
  %v1041 = vunpack.c.h.b16 %v229
  %v1042 = vunpack.c.l.b16 %v230
  %v1043 = vunpack.c.h.b16 %v230
  %v1044 = vunpack.c.l.b16 %v231
  %v1045 = vunpack.c.h.b16 %v231
  %v1046 = vunpack.c.l.b16 %v232
  %v1047 = vunpack.c.h.b16 %v232
  %v1048 = vunpack.c.l.b16 %v233
  %v1049 = vunpack.c.h.b16 %v233
  %v1050 = vunpack.c.l.b16 %v234
  %v1051 = vunpack.c.h.b16 %v234
  %v1052 = vunpack.c.l.b16 %v235
  %v1053 = vunpack.c.h.b16 %v235
  %v1054 = vunpack.c.l.b16 %v236
  %v1055 = vunpack.c.h.b16 %v236
  %v1056 = vunpack.c.l.b16 %v237
  %v1057 = vunpack.c.h.b16 %v237
  %v1058 = vunpack.c.l.b16 %v238
  %v1059 = vunpack.c.h.b16 %v238
  %v1060 = vunpack.c.l.b16 %v239
  %v1061 = vunpack.c.h.b16 %v239
  %v1062 = vunpack.c.l.b16 %v240
  %v1063 = vunpack.c.h.b16 %v240
  %v1064 = vunpack.c.l.b16 %v241
  %v1065 = vunpack.c.h.b16 %v241
  %v1066 = vunpack.c.l.b16 %v242
  %v1067 = vunpack.c.h.b16 %v242
  %v1068 = vunpack.c.l.b16 %v243
  %v1069 = vunpack.c.h.b16 %v243
  %v1070 = vunpack.c.l.b16 %v244
  %v1071 = vunpack.c.h.b16 %v244
  %v1072 = vunpack.c.l.b16 %v245
  %v1073 = vunpack.c.h.b16 %v245
  %v1074 = vunpack.c.l.b16 %v246
  %v1075 = vunpack.c.h.b16 %v246
  %v1076 = vunpack.c.l.b16 %v247
  %v1077 = vunpack.c.h.b16 %v247
  %v1078 = vunpack.c.l.b16 %v248
  %v1079 = vunpack.c.h.b16 %v248
  %v1080 = vunpack.c.l.b16 %v249
  %v1081 = vunpack.c.h.b16 %v249
  %v1082 = vunpack.c.l.b16 %v250
  %v1083 = vunpack.c.h.b16 %v250
  %v1084 = vunpack.c.l.b16 %v251
  %v1085 = vunpack.c.h.b16 %v251
  %v1086 = vunpack.c.l.b16 %v252
  %v1087 = vunpack.c.h.b16 %v252
  %v1088 = vunpack.c.l.b16 %v253
  %v1089 = vunpack.c.h.b16 %v253
  %v1090 = vunpack.c.l.b16 %v254
  %v1091 = vunpack.c.h.b16 %v254
  %v1092 = vunpack.c.l.b16 %v255
  %v1093 = vunpack.c.h.b16 %v255
  %v1094 = vunpack.c.l.b16 %v256
  %v1095 = vunpack.c.h.b16 %v256
  %v1096 = vunpack.c.l.b16 %v257
  %v1097 = vunpack.c.h.b16 %v257
  %v1098 = vunpack.c.l.b16 %v258
  %v1099 = vunpack.c.h.b16 %v258
  %v1100 = vunpack.c.l.b16 %v259
  %v1101 = vunpack.c.h.b16 %v259
  %v1102 = vunpack.c.l.b16 %v260
  %v1103 = vunpack.c.h.b16 %v260
  %v1104 = vunpack.c.l.b16 %v261
  %v1105 = vunpack.c.h.b16 %v261
  %v1106 = vunpack.c.l.b16 %v262
  %v1107 = vunpack.c.h.b16 %v262
  %v1108 = vunpack.c.l.b16 %v263
  %v1109 = vunpack.c.h.b16 %v263
  %v1110 = vunpack.c.l.b16 %v264
  %v1111 = vunpack.c.h.b16 %v264
  %v1112 = vunpack.c.l.b16 %v265
  %v1113 = vunpack.c.h.b16 %v265
  %v1114 = vunpack.c.l.b16 %v266
  %v1115 = vunpack.c.h.b16 %v266
  %v1116 = vunpack.c.l.b16 %v267
  %v1117 = vunpack.c.h.b16 %v267
  %v1118 = vunpack.c.l.b16 %v268
  %v1119 = vunpack.c.h.b16 %v268
  %v1120 = vunpack.c.l.b16 %v269
  %v1121 = vunpack.c.h.b16 %v269
  %v1122 = vunpack.c.l.b16 %v270
  %v1123 = vunpack.c.h.b16 %v270
  %v1124 = vunpack.c.l.b16 %v271
  %v1125 = vunpack.c.h.b16 %v271
  %v1126 = vunpack.c.l.b16 %v272
  %v1127 = vunpack.c.h.b16 %v272
  %v1128 = vunpack.c.l.b16 %v273
  %v1129 = vunpack.c.h.b16 %v273
  %v1130 = vunpack.c.l.b16 %v274
  %v1131 = vunpack.c.h.b16 %v274
  %v1132 = vunpack.c.l.b16 %v275
  %v1133 = vunpack.c.h.b16 %v275
  %v1134 = vunpack.c.l.b16 %v276
  %v1135 = vunpack.c.h.b16 %v276
  %v1136 = vunpack.c.l.b16 %v277
  %v1137 = vunpack.c.h.b16 %v277
  %v1138 = vunpack.c.l.b16 %v278
  %v1139 = vunpack.c.h.b16 %v278
  %v1140 = vunpack.c.l.b16 %v279
  %v1141 = vunpack.c.h.b16 %v279
  %v1142 = vunpack.c.l.b16 %v280
  %v1143 = vunpack.c.h.b16 %v280
  %v1144 = vunpack.c.l.b16 %v281
  %v1145 = vunpack.c.h.b16 %v281
  %v1146 = vunpack.c.l.b16 %v282
  %v1147 = vunpack.c.h.b16 %v282
  %v1148 = vunpack.c.l.b16 %v283
  %v1149 = vunpack.c.h.b16 %v283
  %v1150 = vunpack.c.l.b16 %v284
  %v1151 = vunpack.c.h.b16 %v284
  %v1152 = vunpack.c.l.b16 %v285
  %v1153 = vunpack.c.h.b16 %v285
  %v1154 = vunpack.c.l.b16 %v286
  %v1155 = vunpack.c.h.b16 %v286
  %v1156 = vunpack.c.l.b16 %v287
  %v1157 = vunpack.c.h.b16 %v287
  %v1158 = vunpack.c.l.b16 %v288
  %v1159 = vunpack.c.h.b16 %v288
  %v1160 = vunpack.c.l.b16 %v289
  %v1161 = vunpack.c.h.b16 %v289
  %v1162 = vunpack.c.l.b16 %v290
  %v1163 = vunpack.c.h.b16 %v290
  %v1164 = vunpack.c.l.b16 %v291
  %v1165 = vunpack.c.h.b16 %v291
  %v1166 = vunpack.c.l.b16 %v292
  %v1167 = vunpack.c.h.b16 %v292
  %v1168 = vunpack.c.l.b16 %v293
  %v1169 = vunpack.c.h.b16 %v293
  %v1170 = vunpack.c.l.b16 %v294
  %v1171 = vunpack.c.h.b16 %v294
  %v1172 = vunpack.c.l.b16 %v295
  %v1173 = vunpack.c.h.b16 %v295
  %v1174 = vunpack.c.l.b16 %v296
  %v1175 = vunpack.c.h.b16 %v296
  %v1176 = vunpack.c.l.b16 %v297
  %v1177 = vunpack.c.h.b16 %v297
  %v1178 = vunpack.c.l.b16 %v298
  %v1179 = vunpack.c.h.b16 %v298
  %v1180 = vunpack.c.l.b16 %v299
  %v1181 = vunpack.c.h.b16 %v299
  %v1182 = vunpack.c.l.b16 %v300
  %v1183 = vunpack.c.h.b16 %v300
  %v1184 = vunpack.c.l.b16 %v301
  %v1185 = vunpack.c.h.b16 %v301
  %v1186 = vunpack.c.l.b16 %v302
  %v1187 = vunpack.c.h.b16 %v302
  %v1188 = vunpack.c.l.b16 %v303
  %v1189 = vunpack.c.h.b16 %v303
  %v1190 = vunpack.c.l.b16 %v304
  %v1191 = vunpack.c.h.b16 %v304
  %v1192 = vunpack.c.l.b16 %v305
  %v1193 = vunpack.c.h.b16 %v305
  %v1194 = vunpack.c.l.b16 %v306
  %v1195 = vunpack.c.h.b16 %v306
  %v1196 = vunpack.c.l.b16 %v307
  %v1197 = vunpack.c.h.b16 %v307
  %v1198 = vunpack.c.l.b16 %v308
  %v1199 = vunpack.c.h.b16 %v308
  %v1200 = vunpack.c.l.b16 %v309
  %v1201 = vunpack.c.h.b16 %v309
  %v1202 = vunpack.c.l.b16 %v310
  %v1203 = vunpack.c.h.b16 %v310
  %v1204 = vunpack.c.l.b16 %v311
  %v1205 = vunpack.c.h.b16 %v311
  %v1206 = vunpack.c.l.b16 %v312
  %v1207 = vunpack.c.h.b16 %v312
  %v1208 = vunpack.c.l.b16 %v313
  %v1209 = vunpack.c.h.b16 %v313
  %v1210 = vunpack.c.l.b16 %v314
  %v1211 = vunpack.c.h.b16 %v314
  %v1212 = vunpack.c.l.b16 %v315
  %v1213 = vunpack.c.h.b16 %v315
  %v1214 = vunpack.c.l.b16 %v316
  %v1215 = vunpack.c.h.b16 %v316
  %v1216 = vunpack.c.l.b16 %v317
  %v1217 = vunpack.c.h.b16 %v317
  %v1218 = vunpack.c.l.b16 %v318
  %v1219 = vunpack.c.h.b16 %v318
  %v1220 = vunpack.c.l.b16 %v319
  %v1221 = vunpack.c.h.b16 %v319
  %v1222 = vunpack.c.l.b16 %v320
  %v1223 = vunpack.c.h.b16 %v320
  %v1224 = vunpack.c.l.b16 %v321
  %v1225 = vunpack.c.h.b16 %v321
  %v1226 = vunpack.c.l.b16 %v322
  %v1227 = vunpack.c.h.b16 %v322
  %v1228 = vunpack.c.l.b16 %v323
  %v1229 = vunpack.c.h.b16 %v323
  %v1230 = vunpack.c.l.b16 %v324
  %v1231 = vunpack.c.h.b16 %v324
  %v1232 = vunpack.c.l.b16 %v325
  %v1233 = vunpack.c.h.b16 %v325
  %v1234 = vunpack.c.l.b16 %v326
  %v1235 = vunpack.c.h.b16 %v326
  %v1236 = vunpack.c.l.b16 %v327
  %v1237 = vunpack.c.h.b16 %v327
  %v1238 = vunpack.c.l.b16 %v328
  %v1239 = vunpack.c.h.b16 %v328
  %v1240 = vpack.c.b16 %v852, %v848
  %v1241 = vpack.c.b16 %v853, %v849
  %v1242 = vpack.c.b16 %v854, %v850
  %v1243 = vpack.c.b16 %v855, %v851
  %v1244 = vpack.c.b16 %v860, %v856
  %v1245 = vpack.c.b16 %v861, %v857
  %v1246 = vpack.c.b16 %v862, %v858
  %v1247 = vpack.c.b16 %v863, %v859
  %v1248 = vpack.c.b16 %v868, %v864
  %v1249 = vpack.c.b16 %v869, %v865
  %v1250 = vpack.c.b16 %v870, %v866
  %v1251 = vpack.c.b16 %v871, %v867
  %v1252 = vpack.c.b16 %v876, %v872
  %v1253 = vpack.c.b16 %v877, %v873
  %v1254 = vpack.c.b16 %v878, %v874
  %v1255 = vpack.c.b16 %v879, %v875
  %v1256 = vpack.c.b16 %v884, %v880
  %v1257 = vpack.c.b16 %v885, %v881
  %v1258 = vpack.c.b16 %v886, %v882
  %v1259 = vpack.c.b16 %v887, %v883
  %v1260 = vpack.c.b16 %v892, %v888
  %v1261 = vpack.c.b16 %v893, %v889
  %v1262 = vpack.c.b16 %v894, %v890
  %v1263 = vpack.c.b16 %v895, %v891
  %v1264 = vpack.c.b16 %v900, %v896
  %v1265 = vpack.c.b16 %v901, %v897
  %v1266 = vpack.c.b16 %v902, %v898
  %v1267 = vpack.c.b16 %v903, %v899
  %v1268 = vpack.c.b16 %v908, %v904
  %v1269 = vpack.c.b16 %v909, %v905
  %v1270 = vpack.c.b16 %v910, %v906
  %v1271 = vpack.c.b16 %v911, %v907
  %v1272 = vpack.c.b16 %v916, %v912
  %v1273 = vpack.c.b16 %v917, %v913
  %v1274 = vpack.c.b16 %v918, %v914
  %v1275 = vpack.c.b16 %v919, %v915
  %v1276 = vpack.c.b16 %v924, %v920
  %v1277 = vpack.c.b16 %v925, %v921
  %v1278 = vpack.c.b16 %v926, %v922
  %v1279 = vpack.c.b16 %v927, %v923
  %v1280 = vpack.c.b16 %v932, %v928
  %v1281 = vpack.c.b16 %v933, %v929
  %v1282 = vpack.c.b16 %v934, %v930
  %v1283 = vpack.c.b16 %v935, %v931
  %v1284 = vpack.c.b16 %v940, %v936
  %v1285 = vpack.c.b16 %v941, %v937
  %v1286 = vpack.c.b16 %v942, %v938
  %v1287 = vpack.c.b16 %v943, %v939
  %v1288 = vpack.c.b16 %v948, %v944
  %v1289 = vpack.c.b16 %v949, %v945
  %v1290 = vpack.c.b16 %v950, %v946
  %v1291 = vpack.c.b16 %v951, %v947
  %v1292 = vpack.c.b16 %v956, %v952
  %v1293 = vpack.c.b16 %v957, %v953
  %v1294 = vpack.c.b16 %v958, %v954
  %v1295 = vpack.c.b16 %v959, %v955
  %v1296 = vpack.c.b16 %v964, %v960
  %v1297 = vpack.c.b16 %v965, %v961
  %v1298 = vpack.c.b16 %v966, %v962
  %v1299 = vpack.c.b16 %v967, %v963
  %v1300 = vpack.c.b16 %v972, %v968
  %v1301 = vpack.c.b16 %v973, %v969
  %v1302 = vpack.c.b16 %v974, %v970
  %v1303 = vpack.c.b16 %v975, %v971
  %v1304 = vpack.c.b16 %v980, %v976
  %v1305 = vpack.c.b16 %v981, %v977
  %v1306 = vpack.c.b16 %v982, %v978
  %v1307 = vpack.c.b16 %v983, %v979
  %v1308 = vpack.c.b16 %v988, %v984
  %v1309 = vpack.c.b16 %v989, %v985
  %v1310 = vpack.c.b16 %v990, %v986
  %v1311 = vpack.c.b16 %v991, %v987
  %v1312 = vpack.c.b16 %v996, %v992
  %v1313 = vpack.c.b16 %v997, %v993
  %v1314 = vpack.c.b16 %v998, %v994
  %v1315 = vpack.c.b16 %v999, %v995
  %v1316 = vpack.c.b16 %v1004, %v1000
  %v1317 = vpack.c.b16 %v1005, %v1001
  %v1318 = vpack.c.b16 %v1006, %v1002
  %v1319 = vpack.c.b16 %v1007, %v1003
  %v1320 = vpack.c.b16 %v1012, %v1008
  %v1321 = vpack.c.b16 %v1013, %v1009
  %v1322 = vpack.c.b16 %v1014, %v1010
  %v1323 = vpack.c.b16 %v1015, %v1011
  %v1324 = vpack.c.b16 %v1020, %v1016
  %v1325 = vpack.c.b16 %v1021, %v1017
  %v1326 = vpack.c.b16 %v1022, %v1018
  %v1327 = vpack.c.b16 %v1023, %v1019
  %v1328 = vpack.c.b16 %v1028, %v1024
  %v1329 = vpack.c.b16 %v1029, %v1025
  %v1330 = vpack.c.b16 %v1030, %v1026
  %v1331 = vpack.c.b16 %v1031, %v1027
  %v1332 = vpack.c.b16 %v1036, %v1032
  %v1333 = vpack.c.b16 %v1037, %v1033
  %v1334 = vpack.c.b16 %v1038, %v1034
  %v1335 = vpack.c.b16 %v1039, %v1035
  %v1336 = vpack.c.b16 %v1044, %v1040
  %v1337 = vpack.c.b16 %v1045, %v1041
  %v1338 = vpack.c.b16 %v1046, %v1042
  %v1339 = vpack.c.b16 %v1047, %v1043
  %v1340 = vpack.c.b16 %v1052, %v1048
  %v1341 = vpack.c.b16 %v1053, %v1049
  %v1342 = vpack.c.b16 %v1054, %v1050
  %v1343 = vpack.c.b16 %v1055, %v1051
  %v1344 = vpack.c.b16 %v1060, %v1056
  %v1345 = vpack.c.b16 %v1061, %v1057
  %v1346 = vpack.c.b16 %v1062, %v1058
  %v1347 = vpack.c.b16 %v1063, %v1059
  %v1348 = vpack.c.b16 %v1068, %v1064
  %v1349 = vpack.c.b16 %v1069, %v1065
  %v1350 = vpack.c.b16 %v1070, %v1066
  %v1351 = vpack.c.b16 %v1071, %v1067
  %v1352 = vpack.c.b16 %v1076, %v1072
  %v1353 = vpack.c.b16 %v1077, %v1073
  %v1354 = vpack.c.b16 %v1078, %v1074
  %v1355 = vpack.c.b16 %v1079, %v1075
  %v1356 = vpack.c.b16 %v1084, %v1080
  %v1357 = vpack.c.b16 %v1085, %v1081
  %v1358 = vpack.c.b16 %v1086, %v1082
  %v1359 = vpack.c.b16 %v1087, %v1083
  %v1360 = vpack.c.b16 %v1092, %v1088
  %v1361 = vpack.c.b16 %v1093, %v1089
  %v1362 = vpack.c.b16 %v1094, %v1090
  %v1363 = vpack.c.b16 %v1095, %v1091
  %v1364 = vpack.c.b16 %v1100, %v1096
  %v1365 = vpack.c.b16 %v1101, %v1097
  %v1366 = vpack.c.b16 %v1102, %v1098
  %v1367 = vpack.c.b16 %v1103, %v1099
  %v1368 = vpack.c.b16 %v1108, %v1104
  %v1369 = vpack.c.b16 %v1109, %v1105
  %v1370 = vpack.c.b16 %v1110, %v1106
  %v1371 = vpack.c.b16 %v1111, %v1107
  %v1372 = vpack.c.b16 %v1116, %v1112
  %v1373 = vpack.c.b16 %v1117, %v1113
  %v1374 = vpack.c.b16 %v1118, %v1114
  %v1375 = vpack.c.b16 %v1119, %v1115
  %v1376 = vpack.c.b16 %v1124, %v1120
  %v1377 = vpack.c.b16 %v1125, %v1121
  %v1378 = vpack.c.b16 %v1126, %v1122
  %v1379 = vpack.c.b16 %v1127, %v1123
  %v1380 = vpack.c.b16 %v1132, %v1128
  %v1381 = vpack.c.b16 %v1133, %v1129
  %v1382 = vpack.c.b16 %v1134, %v1130
  %v1383 = vpack.c.b16 %v1135, %v1131
  %v1384 = vpack.c.b16 %v1140, %v1136
  %v1385 = vpack.c.b16 %v1141, %v1137
  %v1386 = vpack.c.b16 %v1142, %v1138
  %v1387 = vpack.c.b16 %v1143, %v1139
  %v1388 = vpack.c.b16 %v1148, %v1144
  %v1389 = vpack.c.b16 %v1149, %v1145
  %v1390 = vpack.c.b16 %v1150, %v1146
  %v1391 = vpack.c.b16 %v1151, %v1147
  %v1392 = vpack.c.b16 %v1156, %v1152
  %v1393 = vpack.c.b16 %v1157, %v1153
  %v1394 = vpack.c.b16 %v1158, %v1154
  %v1395 = vpack.c.b16 %v1159, %v1155
  %v1396 = vpack.c.b16 %v1164, %v1160
  %v1397 = vpack.c.b16 %v1165, %v1161
  %v1398 = vpack.c.b16 %v1166, %v1162
  %v1399 = vpack.c.b16 %v1167, %v1163
  %v1400 = vpack.c.b16 %v1172, %v1168
  %v1401 = vpack.c.b16 %v1173, %v1169
  %v1402 = vpack.c.b16 %v1174, %v1170
  %v1403 = vpack.c.b16 %v1175, %v1171
  %v1404 = vpack.c.b16 %v1180, %v1176
  %v1405 = vpack.c.b16 %v1181, %v1177
  %v1406 = vpack.c.b16 %v1182, %v1178
  %v1407 = vpack.c.b16 %v1183, %v1179
  %v1408 = vpack.c.b16 %v1188, %v1184
  %v1409 = vpack.c.b16 %v1189, %v1185
  %v1410 = vpack.c.b16 %v1190, %v1186
  %v1411 = vpack.c.b16 %v1191, %v1187
  %v1412 = vpack.c.b16 %v1196, %v1192
  %v1413 = vpack.c.b16 %v1197, %v1193
  %v1414 = vpack.c.b16 %v1198, %v1194
  %v1415 = vpack.c.b16 %v1199, %v1195
  %v1416 = vpack.c.b16 %v1204, %v1200
  %v1417 = vpack.c.b16 %v1205, %v1201
  %v1418 = vpack.c.b16 %v1206, %v1202
  %v1419 = vpack.c.b16 %v1207, %v1203
  %v1420 = vpack.c.b16 %v1212, %v1208
  %v1421 = vpack.c.b16 %v1213, %v1209
  %v1422 = vpack.c.b16 %v1214, %v1210
  %v1423 = vpack.c.b16 %v1215, %v1211
  %v1424 = vpack.c.b16 %v1220, %v1216
  %v1425 = vpack.c.b16 %v1221, %v1217
  %v1426 = vpack.c.b16 %v1222, %v1218
  %v1427 = vpack.c.b16 %v1223, %v1219
  %v1428 = vpack.c.b16 %v1228, %v1224
  %v1429 = vpack.c.b16 %v1229, %v1225
  %v1430 = vpack.c.b16 %v1230, %v1226
  %v1431 = vpack.c.b16 %v1231, %v1227
  %v1432 = vpack.c.b16 %v1236, %v1232
  %v1433 = vpack.c.b16 %v1237, %v1233
  %v1434 = vpack.c.b16 %v1238, %v1234
  %v1435 = vpack.c.b16 %v1239, %v1235
  %v1633 = vsel %vm353, %v606, 0
  %v1636 = vsel %vm353, %v613, 0
  %v1639 = vsel %vm353, %v620, 0
  %v1642 = vsel %vm353, %v627, 0
  %1644 = vmatprep.subr.bf16.mxu0 %v1269
  %1645 = vmatpush1.bf16.msra.mxu0 %v1268
  %1646 = vmatprep.subr.bf16.mxu0 %v1265
  %1647 = vmatpush1.bf16.msra.mxu0 %v1264
  %1648 = vmatprep.subr.bf16.mxu0 %v1261
  %1649 = vmatpush1.bf16.msra.mxu0 %v1260
  %1650 = vmatprep.subr.bf16.mxu0 %v1257
  %1651 = vmatpush1.bf16.msra.mxu0 %v1256
  %1652 = vmatprep.subr.bf16.mxu0 %v1253
  %1653 = vmatpush1.bf16.msra.mxu0 %v1252
  %1654 = vmatprep.subr.bf16.mxu0 %v1249
  %1655 = vmatpush1.bf16.msra.mxu0 %v1248
  %1656 = vmatprep.subr.bf16.mxu0 %v1245
  %1657 = vmatpush1.bf16.msra.mxu0 %v1244
  %1658 = vmatprep.subr.bf16.mxu0 %v1241
  %1659 = vmatpush1.bf16.msra.mxu0 %v1240
  %1660 = vmatprep.subr.bf16.mxu0 %v1301
  %1661 = vmatpush2.bf16.msra.mxu0 %v1300
  %1662 = vmatprep.subr.bf16.mxu0 %v1297
  %1663 = vmatpush2.bf16.msra.mxu0 %v1296
  %1664 = vmatprep.subr.bf16.mxu0 %v1293
  %1665 = vmatpush2.bf16.msra.mxu0 %v1292
  %1666 = vmatprep.subr.bf16.mxu0 %v1289
  %1667 = vmatpush2.bf16.msra.mxu0 %v1288
  %1668 = vmatprep.subr.bf16.mxu0 %v1285
  %1669 = vmatpush2.bf16.msra.mxu0 %v1284
  %1670 = vmatprep.subr.bf16.mxu0 %v1281
  %1671 = vmatpush2.bf16.msra.mxu0 %v1280
  %1672 = vmatprep.subr.bf16.mxu0 %v1277
  %1673 = vmatpush2.bf16.msra.mxu0 %v1276
  %1674 = vmatprep.subr.bf16.mxu0 %v1273
  %1675 = vmatpush2.bf16.msra.mxu0 %v1272
  %1676 = vmatprep.mubr.bf16.mxu0 %v601
  %1677 = vmatmul.mubr.bf16.gmra.mxu0 %v600
  %v1678 = vpop.f32.mrf.mxu0
  %v1679 = vadd.f32 %v401, %v1678
  %v1680 = vpop.f32.mrf.mxu0
  %v1681 = vadd.f32 %v403, %v1680
  %v1682 = vpop.f32.mrf.mxu0
  %v1683 = vadd.f32 %v405, %v1682
  %v1684 = vpop.f32.mrf.mxu0
  %v1685 = vadd.f32 %v407, %v1684
  %1686 = vmatprep.mubr.bf16.mxu0 %v608
  %1687 = vmatmul.mubr.bf16.gmra.mxu0 %v607
  %v1688 = vpop.f32.mrf.mxu0
  %v1689 = vadd.f32 %v411, %v1688
  %v1690 = vpop.f32.mrf.mxu0
  %v1691 = vadd.f32 %v413, %v1690
  %v1692 = vpop.f32.mrf.mxu0
  %v1693 = vadd.f32 %v415, %v1692
  %v1694 = vpop.f32.mrf.mxu0
  %v1695 = vadd.f32 %v417, %v1694
  %1696 = vmatprep.mubr.bf16.mxu0 %v615
  %1697 = vmatmul.mubr.bf16.gmra.mxu0 %v614
  %v1698 = vpop.f32.mrf.mxu0
  %v1699 = vadd.f32 %v421, %v1698
  %v1700 = vpop.f32.mrf.mxu0
  %v1701 = vadd.f32 %v423, %v1700
  %v1702 = vpop.f32.mrf.mxu0
  %v1703 = vadd.f32 %v425, %v1702
  %v1704 = vpop.f32.mrf.mxu0
  %v1705 = vadd.f32 %v427, %v1704
  %1706 = vmatprep.mubr.bf16.mxu0 %v622
  %1707 = vmatmul.mubr.bf16.gmra.mxu0 %v621
  %v1708 = vpop.f32.mrf.mxu0
  %v1709 = vadd.f32 %v431, %v1708
  %v1710 = vpop.f32.mrf.mxu0
  %v1711 = vadd.f32 %v433, %v1710
  %v1712 = vpop.f32.mrf.mxu0
  %v1713 = vadd.f32 %v435, %v1712
  %v1714 = vpop.f32.mrf.mxu0
  %v1715 = vadd.f32 %v437, %v1714
  %1716 = vdwg.mxu0
  %1717 = vmatprep.subr.bf16.mxu0 %v1333
  %1718 = vmatpush1.bf16.msra.mxu0 %v1332
  %1719 = vmatprep.subr.bf16.mxu0 %v1329
  %1720 = vmatpush1.bf16.msra.mxu0 %v1328
  %1721 = vmatprep.subr.bf16.mxu0 %v1325
  %1722 = vmatpush1.bf16.msra.mxu0 %v1324
  %1723 = vmatprep.subr.bf16.mxu0 %v1321
  %1724 = vmatpush1.bf16.msra.mxu0 %v1320
  %1725 = vmatprep.subr.bf16.mxu0 %v1317
  %1726 = vmatpush1.bf16.msra.mxu0 %v1316
  %1727 = vmatprep.subr.bf16.mxu0 %v1313
  %1728 = vmatpush1.bf16.msra.mxu0 %v1312
  %1729 = vmatprep.subr.bf16.mxu0 %v1309
  %1730 = vmatpush1.bf16.msra.mxu0 %v1308
  %1731 = vmatprep.subr.bf16.mxu0 %v1305
  %1732 = vmatpush1.bf16.msra.mxu0 %v1304
  %1733 = vmatprep.subr.bf16.mxu0 %v1365
  %1734 = vmatpush2.bf16.msra.mxu0 %v1364
  %1735 = vmatprep.subr.bf16.mxu0 %v1361
  %1736 = vmatpush2.bf16.msra.mxu0 %v1360
  %1737 = vmatprep.subr.bf16.mxu0 %v1357
  %1738 = vmatpush2.bf16.msra.mxu0 %v1356
  %1739 = vmatprep.subr.bf16.mxu0 %v1353
  %1740 = vmatpush2.bf16.msra.mxu0 %v1352
  %1741 = vmatprep.subr.bf16.mxu0 %v1349
  %1742 = vmatpush2.bf16.msra.mxu0 %v1348
  %1743 = vmatprep.subr.bf16.mxu0 %v1345
  %1744 = vmatpush2.bf16.msra.mxu0 %v1344
  %1745 = vmatprep.subr.bf16.mxu0 %v1341
  %1746 = vmatpush2.bf16.msra.mxu0 %v1340
  %1747 = vmatprep.subr.bf16.mxu0 %v1337
  %1748 = vmatpush2.bf16.msra.mxu0 %v1336
  %1749 = vmatprep.mubr.bf16.mxu0 %v603
  %1750 = vmatmul.mubr.bf16.gmra.mxu0 %v602
  %v1751 = vpop.f32.mrf.mxu0
  %v1752 = vadd.f32 %v1679, %v1751
  %v1753 = vpop.f32.mrf.mxu0
  %v1754 = vadd.f32 %v1681, %v1753
  %v1755 = vpop.f32.mrf.mxu0
  %v1756 = vadd.f32 %v1683, %v1755
  %v1757 = vpop.f32.mrf.mxu0
  %v1758 = vadd.f32 %v1685, %v1757
  %1759 = vmatprep.mubr.bf16.mxu0 %v610
  %1760 = vmatmul.mubr.bf16.gmra.mxu0 %v609
  %v1761 = vpop.f32.mrf.mxu0
  %v1762 = vadd.f32 %v1689, %v1761
  %v1763 = vpop.f32.mrf.mxu0
  %v1764 = vadd.f32 %v1691, %v1763
  %v1765 = vpop.f32.mrf.mxu0
  %v1766 = vadd.f32 %v1693, %v1765
  %v1767 = vpop.f32.mrf.mxu0
  %v1768 = vadd.f32 %v1695, %v1767
  %1769 = vmatprep.mubr.bf16.mxu0 %v617
  %1770 = vmatmul.mubr.bf16.gmra.mxu0 %v616
  %v1771 = vpop.f32.mrf.mxu0
  %v1772 = vadd.f32 %v1699, %v1771
  %v1773 = vpop.f32.mrf.mxu0
  %v1774 = vadd.f32 %v1701, %v1773
  %v1775 = vpop.f32.mrf.mxu0
  %v1776 = vadd.f32 %v1703, %v1775
  %v1777 = vpop.f32.mrf.mxu0
  %v1778 = vadd.f32 %v1705, %v1777
  %1779 = vmatprep.mubr.bf16.mxu0 %v624
  %1780 = vmatmul.mubr.bf16.gmra.mxu0 %v623
  %v1781 = vpop.f32.mrf.mxu0
  %v1782 = vadd.f32 %v1709, %v1781
  %v1783 = vpop.f32.mrf.mxu0
  %v1784 = vadd.f32 %v1711, %v1783
  %v1785 = vpop.f32.mrf.mxu0
  %v1786 = vadd.f32 %v1713, %v1785
  %v1787 = vpop.f32.mrf.mxu0
  %v1788 = vadd.f32 %v1715, %v1787
  %1789 = vdwg.mxu0
  %1790 = vmatprep.subr.bf16.mxu0 %v1397
  %1791 = vmatpush1.bf16.msra.mxu0 %v1396
  %1792 = vmatprep.subr.bf16.mxu0 %v1393
  %1793 = vmatpush1.bf16.msra.mxu0 %v1392
  %1794 = vmatprep.subr.bf16.mxu0 %v1389
  %1795 = vmatpush1.bf16.msra.mxu0 %v1388
  %1796 = vmatprep.subr.bf16.mxu0 %v1385
  %1797 = vmatpush1.bf16.msra.mxu0 %v1384
  %1798 = vmatprep.subr.bf16.mxu0 %v1381
  %1799 = vmatpush1.bf16.msra.mxu0 %v1380
  %1800 = vmatprep.subr.bf16.mxu0 %v1377
  %1801 = vmatpush1.bf16.msra.mxu0 %v1376
  %1802 = vmatprep.subr.bf16.mxu0 %v1373
  %1803 = vmatpush1.bf16.msra.mxu0 %v1372
  %1804 = vmatprep.subr.bf16.mxu0 %v1369
  %1805 = vmatpush1.bf16.msra.mxu0 %v1368
  %1806 = vmatprep.subr.bf16.mxu0 %v1429
  %1807 = vmatpush2.bf16.msra.mxu0 %v1428
  %1808 = vmatprep.subr.bf16.mxu0 %v1425
  %1809 = vmatpush2.bf16.msra.mxu0 %v1424
  %1810 = vmatprep.subr.bf16.mxu0 %v1421
  %1811 = vmatpush2.bf16.msra.mxu0 %v1420
  %1812 = vmatprep.subr.bf16.mxu0 %v1417
  %1813 = vmatpush2.bf16.msra.mxu0 %v1416
  %1814 = vmatprep.subr.bf16.mxu0 %v1413
  %1815 = vmatpush2.bf16.msra.mxu0 %v1412
  %1816 = vmatprep.subr.bf16.mxu0 %v1409
  %1817 = vmatpush2.bf16.msra.mxu0 %v1408
  %1818 = vmatprep.subr.bf16.mxu0 %v1405
  %1819 = vmatpush2.bf16.msra.mxu0 %v1404
  %1820 = vmatprep.subr.bf16.mxu0 %v1401
  %1821 = vmatpush2.bf16.msra.mxu0 %v1400
  %1822 = vmatprep.mubr.bf16.mxu0 %v605
  %1823 = vmatmul.mubr.bf16.gmra.mxu0 %v604
  %v1824 = vpop.f32.mrf.mxu0
  %v1825 = vadd.f32 %v1752, %v1824
  %v1826 = vpop.f32.mrf.mxu0
  %v1827 = vadd.f32 %v1754, %v1826
  %v1828 = vpop.f32.mrf.mxu0
  %v1829 = vadd.f32 %v1756, %v1828
  %v1830 = vpop.f32.mrf.mxu0
  %v1831 = vadd.f32 %v1758, %v1830
  %1832 = vmatprep.mubr.bf16.mxu0 %v612
  %1833 = vmatmul.mubr.bf16.gmra.mxu0 %v611
  %v1834 = vpop.f32.mrf.mxu0
  %v1835 = vadd.f32 %v1762, %v1834
  %v1836 = vpop.f32.mrf.mxu0
  %v1837 = vadd.f32 %v1764, %v1836
  %v1838 = vpop.f32.mrf.mxu0
  %v1839 = vadd.f32 %v1766, %v1838
  %v1840 = vpop.f32.mrf.mxu0
  %v1841 = vadd.f32 %v1768, %v1840
  %1842 = vmatprep.mubr.bf16.mxu0 %v619
  %1843 = vmatmul.mubr.bf16.gmra.mxu0 %v618
  %v1844 = vpop.f32.mrf.mxu0
  %v1845 = vadd.f32 %v1772, %v1844
  %v1846 = vpop.f32.mrf.mxu0
  %v1847 = vadd.f32 %v1774, %v1846
  %v1848 = vpop.f32.mrf.mxu0
  %v1849 = vadd.f32 %v1776, %v1848
  %v1850 = vpop.f32.mrf.mxu0
  %v1851 = vadd.f32 %v1778, %v1850
  %1852 = vmatprep.mubr.bf16.mxu0 %v626
  %1853 = vmatmul.mubr.bf16.gmra.mxu0 %v625
  %v1854 = vpop.f32.mrf.mxu0
  %v1855 = vadd.f32 %v1782, %v1854
  %v1856 = vpop.f32.mrf.mxu0
  %v1857 = vadd.f32 %v1784, %v1856
  %v1858 = vpop.f32.mrf.mxu0
  %v1859 = vadd.f32 %v1786, %v1858
  %v1860 = vpop.f32.mrf.mxu0
  %v1861 = vadd.f32 %v1788, %v1860
  %1862 = vdwg.mxu0
  %1863 = vmatprep.subr.bf16.mxu0 0
  %1864 = vmatpush1.bf16.msra.mxu0 0
  %1865 = vmatprep.subr.bf16.mxu0 0
  %1866 = vmatpush1.bf16.msra.mxu0 0
  %1867 = vmatprep.subr.bf16.mxu0 0
  %1868 = vmatpush1.bf16.msra.mxu0 0
  %1869 = vmatprep.subr.bf16.mxu0 0
  %1870 = vmatpush1.bf16.msra.mxu0 0
  %1871 = vmatprep.subr.bf16.mxu0 0
  %1872 = vmatpush1.bf16.msra.mxu0 0
  %1873 = vmatprep.subr.bf16.mxu0 0
  %1874 = vmatpush1.bf16.msra.mxu0 0
  %1875 = vmatprep.subr.bf16.mxu0 0
  %1876 = vmatpush1.bf16.msra.mxu0 0
  %1877 = vmatprep.subr.bf16.mxu0 %v1433
  %1878 = vmatpush1.bf16.msra.mxu0 %v1432
  %1879 = vmatprep.subr.bf16.mxu0 0
  %1880 = vmatpush2.bf16.msra.mxu0 0
  %1881 = vmatprep.subr.bf16.mxu0 0
  %1882 = vmatpush2.bf16.msra.mxu0 0
  %1883 = vmatprep.subr.bf16.mxu0 0
  %1884 = vmatpush2.bf16.msra.mxu0 0
  %1885 = vmatprep.subr.bf16.mxu0 0
  %1886 = vmatpush2.bf16.msra.mxu0 0
  %1887 = vmatprep.subr.bf16.mxu0 0
  %1888 = vmatpush2.bf16.msra.mxu0 0
  %1889 = vmatprep.subr.bf16.mxu0 0
  %1890 = vmatpush2.bf16.msra.mxu0 0
  %1891 = vmatprep.subr.bf16.mxu0 0
  %1892 = vmatpush2.bf16.msra.mxu0 0
  %1893 = vmatprep.subr.bf16.mxu0 0
  %1894 = vmatpush2.bf16.msra.mxu0 0
  %1895 = vmatprep.mubr.bf16.mxu0 0
  %1896 = vmatmul.mubr.bf16.gmra.mxu0 %v1633
  %v1897 = vpop.f32.mrf.mxu0
  %v1898 = vadd.f32 %v1825, %v1897
  %v1899 = vpop.f32.mrf.mxu0
  %v1900 = vadd.f32 %v1827, %v1899
  %v1901 = vpop.f32.mrf.mxu0
  %v1902 = vadd.f32 %v1829, %v1901
  %v1903 = vpop.f32.mrf.mxu0
  %v1904 = vadd.f32 %v1831, %v1903
  %1905 = vmatprep.mubr.bf16.mxu0 0
  %1906 = vmatmul.mubr.bf16.gmra.mxu0 %v1636
  %v1907 = vpop.f32.mrf.mxu0
  %v1908 = vadd.f32 %v1835, %v1907
  %v1909 = vpop.f32.mrf.mxu0
  %v1910 = vadd.f32 %v1837, %v1909
  %v1911 = vpop.f32.mrf.mxu0
  %v1912 = vadd.f32 %v1839, %v1911
  %v1913 = vpop.f32.mrf.mxu0
  %v1914 = vadd.f32 %v1841, %v1913
  %1915 = vmatprep.mubr.bf16.mxu0 0
  %1916 = vmatmul.mubr.bf16.gmra.mxu0 %v1639
  %v1917 = vpop.f32.mrf.mxu0
  %v1918 = vadd.f32 %v1845, %v1917
  %v1919 = vpop.f32.mrf.mxu0
  %v1920 = vadd.f32 %v1847, %v1919
  %v1921 = vpop.f32.mrf.mxu0
  %v1922 = vadd.f32 %v1849, %v1921
  %v1923 = vpop.f32.mrf.mxu0
  %v1924 = vadd.f32 %v1851, %v1923
  %1925 = vmatprep.mubr.bf16.mxu0 0
  %1926 = vmatmul.mubr.bf16.gmra.mxu0 %v1642
  %v1927 = vpop.f32.mrf.mxu0
  %v1928 = vadd.f32 %v1855, %v1927
  %v1929 = vpop.f32.mrf.mxu0
  %v1930 = vadd.f32 %v1857, %v1929
  %v1931 = vpop.f32.mrf.mxu0
  %v1932 = vadd.f32 %v1859, %v1931
  %v1933 = vpop.f32.mrf.mxu0
  %v1934 = vadd.f32 %v1861, %v1933
  %1935 = vdwg.mxu0
  %1936 = vmatprep.subr.bf16.mxu0 %v1271
  %1937 = vmatpush1.bf16.msra.mxu0 %v1270
  %1938 = vmatprep.subr.bf16.mxu0 %v1267
  %1939 = vmatpush1.bf16.msra.mxu0 %v1266
  %1940 = vmatprep.subr.bf16.mxu0 %v1263
  %1941 = vmatpush1.bf16.msra.mxu0 %v1262
  %1942 = vmatprep.subr.bf16.mxu0 %v1259
  %1943 = vmatpush1.bf16.msra.mxu0 %v1258
  %1944 = vmatprep.subr.bf16.mxu0 %v1255
  %1945 = vmatpush1.bf16.msra.mxu0 %v1254
  %1946 = vmatprep.subr.bf16.mxu0 %v1251
  %1947 = vmatpush1.bf16.msra.mxu0 %v1250
  %1948 = vmatprep.subr.bf16.mxu0 %v1247
  %1949 = vmatpush1.bf16.msra.mxu0 %v1246
  %1950 = vmatprep.subr.bf16.mxu0 %v1243
  %1951 = vmatpush1.bf16.msra.mxu0 %v1242
  %1952 = vmatprep.subr.bf16.mxu0 %v1303
  %1953 = vmatpush2.bf16.msra.mxu0 %v1302
  %1954 = vmatprep.subr.bf16.mxu0 %v1299
  %1955 = vmatpush2.bf16.msra.mxu0 %v1298
  %1956 = vmatprep.subr.bf16.mxu0 %v1295
  %1957 = vmatpush2.bf16.msra.mxu0 %v1294
  %1958 = vmatprep.subr.bf16.mxu0 %v1291
  %1959 = vmatpush2.bf16.msra.mxu0 %v1290
  %1960 = vmatprep.subr.bf16.mxu0 %v1287
  %1961 = vmatpush2.bf16.msra.mxu0 %v1286
  %1962 = vmatprep.subr.bf16.mxu0 %v1283
  %1963 = vmatpush2.bf16.msra.mxu0 %v1282
  %1964 = vmatprep.subr.bf16.mxu0 %v1279
  %1965 = vmatpush2.bf16.msra.mxu0 %v1278
  %1966 = vmatprep.subr.bf16.mxu0 %v1275
  %1967 = vmatpush2.bf16.msra.mxu0 %v1274
  %1968 = vmatprep.mubr.bf16.mxu0 %v601
  %1969 = vmatmul.mubr.bf16.gmra.mxu0 %v600
  %v1970 = vpop.f32.mrf.mxu0
  %v1971 = vadd.f32 %v474, %v1970
  %v1972 = vpop.f32.mrf.mxu0
  %v1973 = vadd.f32 %v476, %v1972
  %v1974 = vpop.f32.mrf.mxu0
  %v1975 = vadd.f32 %v478, %v1974
  %v1976 = vpop.f32.mrf.mxu0
  %v1977 = vadd.f32 %v480, %v1976
  %1978 = vmatprep.mubr.bf16.mxu0 %v608
  %1979 = vmatmul.mubr.bf16.gmra.mxu0 %v607
  %v1980 = vpop.f32.mrf.mxu0
  %v1981 = vadd.f32 %v484, %v1980
  %v1982 = vpop.f32.mrf.mxu0
  %v1983 = vadd.f32 %v486, %v1982
  %v1984 = vpop.f32.mrf.mxu0
  %v1985 = vadd.f32 %v488, %v1984
  %v1986 = vpop.f32.mrf.mxu0
  %v1987 = vadd.f32 %v490, %v1986
  %1988 = vmatprep.mubr.bf16.mxu0 %v615
  %1989 = vmatmul.mubr.bf16.gmra.mxu0 %v614
  %v1990 = vpop.f32.mrf.mxu0
  %v1991 = vadd.f32 %v494, %v1990
  %v1992 = vpop.f32.mrf.mxu0
  %v1993 = vadd.f32 %v496, %v1992
  %v1994 = vpop.f32.mrf.mxu0
  %v1995 = vadd.f32 %v498, %v1994
  %v1996 = vpop.f32.mrf.mxu0
  %v1997 = vadd.f32 %v500, %v1996
  %1998 = vmatprep.mubr.bf16.mxu0 %v622
  %1999 = vmatmul.mubr.bf16.gmra.mxu0 %v621
  %v2000 = vpop.f32.mrf.mxu0
  %v2001 = vadd.f32 %v504, %v2000
  %v2002 = vpop.f32.mrf.mxu0
  %v2003 = vadd.f32 %v506, %v2002
  %v2004 = vpop.f32.mrf.mxu0
  %v2005 = vadd.f32 %v508, %v2004
  %v2006 = vpop.f32.mrf.mxu0
  %v2007 = vadd.f32 %v510, %v2006
  %2008 = vdwg.mxu0
  %2009 = vmatprep.subr.bf16.mxu0 %v1335
  %2010 = vmatpush1.bf16.msra.mxu0 %v1334
  %2011 = vmatprep.subr.bf16.mxu0 %v1331
  %2012 = vmatpush1.bf16.msra.mxu0 %v1330
  %2013 = vmatprep.subr.bf16.mxu0 %v1327
  %2014 = vmatpush1.bf16.msra.mxu0 %v1326
  %2015 = vmatprep.subr.bf16.mxu0 %v1323
  %2016 = vmatpush1.bf16.msra.mxu0 %v1322
  %2017 = vmatprep.subr.bf16.mxu0 %v1319
  %2018 = vmatpush1.bf16.msra.mxu0 %v1318
  %2019 = vmatprep.subr.bf16.mxu0 %v1315
  %2020 = vmatpush1.bf16.msra.mxu0 %v1314
  %2021 = vmatprep.subr.bf16.mxu0 %v1311
  %2022 = vmatpush1.bf16.msra.mxu0 %v1310
  %2023 = vmatprep.subr.bf16.mxu0 %v1307
  %2024 = vmatpush1.bf16.msra.mxu0 %v1306
  %2025 = vmatprep.subr.bf16.mxu0 %v1367
  %2026 = vmatpush2.bf16.msra.mxu0 %v1366
  %2027 = vmatprep.subr.bf16.mxu0 %v1363
  %2028 = vmatpush2.bf16.msra.mxu0 %v1362
  %2029 = vmatprep.subr.bf16.mxu0 %v1359
  %2030 = vmatpush2.bf16.msra.mxu0 %v1358
  %2031 = vmatprep.subr.bf16.mxu0 %v1355
  %2032 = vmatpush2.bf16.msra.mxu0 %v1354
  %2033 = vmatprep.subr.bf16.mxu0 %v1351
  %2034 = vmatpush2.bf16.msra.mxu0 %v1350
  %2035 = vmatprep.subr.bf16.mxu0 %v1347
  %2036 = vmatpush2.bf16.msra.mxu0 %v1346
  %2037 = vmatprep.subr.bf16.mxu0 %v1343
  %2038 = vmatpush2.bf16.msra.mxu0 %v1342
  %2039 = vmatprep.subr.bf16.mxu0 %v1339
  %2040 = vmatpush2.bf16.msra.mxu0 %v1338
  %2041 = vmatprep.mubr.bf16.mxu0 %v603
  %2042 = vmatmul.mubr.bf16.gmra.mxu0 %v602
  %v2043 = vpop.f32.mrf.mxu0
  %v2044 = vadd.f32 %v1971, %v2043
  %v2045 = vpop.f32.mrf.mxu0
  %v2046 = vadd.f32 %v1973, %v2045
  %v2047 = vpop.f32.mrf.mxu0
  %v2048 = vadd.f32 %v1975, %v2047
  %v2049 = vpop.f32.mrf.mxu0
  %v2050 = vadd.f32 %v1977, %v2049
  %2051 = vmatprep.mubr.bf16.mxu0 %v610
  %2052 = vmatmul.mubr.bf16.gmra.mxu0 %v609
  %v2053 = vpop.f32.mrf.mxu0
  %v2054 = vadd.f32 %v1981, %v2053
  %v2055 = vpop.f32.mrf.mxu0
  %v2056 = vadd.f32 %v1983, %v2055
  %v2057 = vpop.f32.mrf.mxu0
  %v2058 = vadd.f32 %v1985, %v2057
  %v2059 = vpop.f32.mrf.mxu0
  %v2060 = vadd.f32 %v1987, %v2059
  %2061 = vmatprep.mubr.bf16.mxu0 %v617
  %2062 = vmatmul.mubr.bf16.gmra.mxu0 %v616
  %v2063 = vpop.f32.mrf.mxu0
  %v2064 = vadd.f32 %v1991, %v2063
  %v2065 = vpop.f32.mrf.mxu0
  %v2066 = vadd.f32 %v1993, %v2065
  %v2067 = vpop.f32.mrf.mxu0
  %v2068 = vadd.f32 %v1995, %v2067
  %v2069 = vpop.f32.mrf.mxu0
  %v2070 = vadd.f32 %v1997, %v2069
  %2071 = vmatprep.mubr.bf16.mxu0 %v624
  %2072 = vmatmul.mubr.bf16.gmra.mxu0 %v623
  %v2073 = vpop.f32.mrf.mxu0
  %v2074 = vadd.f32 %v2001, %v2073
  %v2075 = vpop.f32.mrf.mxu0
  %v2076 = vadd.f32 %v2003, %v2075
  %v2077 = vpop.f32.mrf.mxu0
  %v2078 = vadd.f32 %v2005, %v2077
  %v2079 = vpop.f32.mrf.mxu0
  %v2080 = vadd.f32 %v2007, %v2079
  %2081 = vdwg.mxu0
  %2082 = vmatprep.subr.bf16.mxu0 %v1399
  %2083 = vmatpush1.bf16.msra.mxu0 %v1398
  %2084 = vmatprep.subr.bf16.mxu0 %v1395
  %2085 = vmatpush1.bf16.msra.mxu0 %v1394
  %2086 = vmatprep.subr.bf16.mxu0 %v1391
  %2087 = vmatpush1.bf16.msra.mxu0 %v1390
  %2088 = vmatprep.subr.bf16.mxu0 %v1387
  %2089 = vmatpush1.bf16.msra.mxu0 %v1386
  %2090 = vmatprep.subr.bf16.mxu0 %v1383
  %2091 = vmatpush1.bf16.msra.mxu0 %v1382
  %2092 = vmatprep.subr.bf16.mxu0 %v1379
  %2093 = vmatpush1.bf16.msra.mxu0 %v1378
  %2094 = vmatprep.subr.bf16.mxu0 %v1375
  %2095 = vmatpush1.bf16.msra.mxu0 %v1374
  %2096 = vmatprep.subr.bf16.mxu0 %v1371
  %2097 = vmatpush1.bf16.msra.mxu0 %v1370
  %2098 = vmatprep.subr.bf16.mxu0 %v1431
  %2099 = vmatpush2.bf16.msra.mxu0 %v1430
  %2100 = vmatprep.subr.bf16.mxu0 %v1427
  %2101 = vmatpush2.bf16.msra.mxu0 %v1426
  %2102 = vmatprep.subr.bf16.mxu0 %v1423
  %2103 = vmatpush2.bf16.msra.mxu0 %v1422
  %2104 = vmatprep.subr.bf16.mxu0 %v1419
  %2105 = vmatpush2.bf16.msra.mxu0 %v1418
  %2106 = vmatprep.subr.bf16.mxu0 %v1415
  %2107 = vmatpush2.bf16.msra.mxu0 %v1414
  %2108 = vmatprep.subr.bf16.mxu0 %v1411
  %2109 = vmatpush2.bf16.msra.mxu0 %v1410
  %2110 = vmatprep.subr.bf16.mxu0 %v1407
  %2111 = vmatpush2.bf16.msra.mxu0 %v1406
  %2112 = vmatprep.subr.bf16.mxu0 %v1403
  %2113 = vmatpush2.bf16.msra.mxu0 %v1402
  %2114 = vmatprep.mubr.bf16.mxu0 %v605
  %2115 = vmatmul.mubr.bf16.gmra.mxu0 %v604
  %v2116 = vpop.f32.mrf.mxu0
  %v2117 = vadd.f32 %v2044, %v2116
  %v2118 = vpop.f32.mrf.mxu0
  %v2119 = vadd.f32 %v2046, %v2118
  %v2120 = vpop.f32.mrf.mxu0
  %v2121 = vadd.f32 %v2048, %v2120
  %v2122 = vpop.f32.mrf.mxu0
  %v2123 = vadd.f32 %v2050, %v2122
  %2124 = vmatprep.mubr.bf16.mxu0 %v612
  %2125 = vmatmul.mubr.bf16.gmra.mxu0 %v611
  %v2126 = vpop.f32.mrf.mxu0
  %v2127 = vadd.f32 %v2054, %v2126
  %v2128 = vpop.f32.mrf.mxu0
  %v2129 = vadd.f32 %v2056, %v2128
  %v2130 = vpop.f32.mrf.mxu0
  %v2131 = vadd.f32 %v2058, %v2130
  %v2132 = vpop.f32.mrf.mxu0
  %v2133 = vadd.f32 %v2060, %v2132
  %2134 = vmatprep.mubr.bf16.mxu0 %v619
  %2135 = vmatmul.mubr.bf16.gmra.mxu0 %v618
  %v2136 = vpop.f32.mrf.mxu0
  %v2137 = vadd.f32 %v2064, %v2136
  %v2138 = vpop.f32.mrf.mxu0
  %v2139 = vadd.f32 %v2066, %v2138
  %v2140 = vpop.f32.mrf.mxu0
  %v2141 = vadd.f32 %v2068, %v2140
  %v2142 = vpop.f32.mrf.mxu0
  %v2143 = vadd.f32 %v2070, %v2142
  %2144 = vmatprep.mubr.bf16.mxu0 %v626
  %2145 = vmatmul.mubr.bf16.gmra.mxu0 %v625
  %v2146 = vpop.f32.mrf.mxu0
  %v2147 = vadd.f32 %v2074, %v2146
  %v2148 = vpop.f32.mrf.mxu0
  %v2149 = vadd.f32 %v2076, %v2148
  %v2150 = vpop.f32.mrf.mxu0
  %v2151 = vadd.f32 %v2078, %v2150
  %v2152 = vpop.f32.mrf.mxu0
  %v2153 = vadd.f32 %v2080, %v2152
  %2154 = vdwg.mxu0
  %2155 = vmatprep.subr.bf16.mxu0 0
  %2156 = vmatpush1.bf16.msra.mxu0 0
  %2157 = vmatprep.subr.bf16.mxu0 0
  %2158 = vmatpush1.bf16.msra.mxu0 0
  %2159 = vmatprep.subr.bf16.mxu0 0
  %2160 = vmatpush1.bf16.msra.mxu0 0
  %2161 = vmatprep.subr.bf16.mxu0 0
  %2162 = vmatpush1.bf16.msra.mxu0 0
  %2163 = vmatprep.subr.bf16.mxu0 0
  %2164 = vmatpush1.bf16.msra.mxu0 0
  %2165 = vmatprep.subr.bf16.mxu0 0
  %2166 = vmatpush1.bf16.msra.mxu0 0
  %2167 = vmatprep.subr.bf16.mxu0 0
  %2168 = vmatpush1.bf16.msra.mxu0 0
  %2169 = vmatprep.subr.bf16.mxu0 %v1435
  %2170 = vmatpush1.bf16.msra.mxu0 %v1434
  %2171 = vmatprep.subr.bf16.mxu0 0
  %2172 = vmatpush2.bf16.msra.mxu0 0
  %2173 = vmatprep.subr.bf16.mxu0 0
  %2174 = vmatpush2.bf16.msra.mxu0 0
  %2175 = vmatprep.subr.bf16.mxu0 0
  %2176 = vmatpush2.bf16.msra.mxu0 0
  %2177 = vmatprep.subr.bf16.mxu0 0
  %2178 = vmatpush2.bf16.msra.mxu0 0
  %2179 = vmatprep.subr.bf16.mxu0 0
  %2180 = vmatpush2.bf16.msra.mxu0 0
  %2181 = vmatprep.subr.bf16.mxu0 0
  %2182 = vmatpush2.bf16.msra.mxu0 0
  %2183 = vmatprep.subr.bf16.mxu0 0
  %2184 = vmatpush2.bf16.msra.mxu0 0
  %2185 = vmatprep.subr.bf16.mxu0 0
  %2186 = vmatpush2.bf16.msra.mxu0 0
  %2187 = vmatprep.mubr.bf16.mxu0 0
  %2188 = vmatmul.mubr.bf16.gmra.mxu0 %v1633
  %v2189 = vpop.f32.mrf.mxu0
  %v2190 = vadd.f32 %v2117, %v2189
  %v2191 = vpop.f32.mrf.mxu0
  %v2192 = vadd.f32 %v2119, %v2191
  %v2193 = vpop.f32.mrf.mxu0
  %v2194 = vadd.f32 %v2121, %v2193
  %v2195 = vpop.f32.mrf.mxu0
  %v2196 = vadd.f32 %v2123, %v2195
  %2197 = vmatprep.mubr.bf16.mxu0 0
  %2198 = vmatmul.mubr.bf16.gmra.mxu0 %v1636
  %v2199 = vpop.f32.mrf.mxu0
  %v2200 = vadd.f32 %v2127, %v2199
  %v2201 = vpop.f32.mrf.mxu0
  %v2202 = vadd.f32 %v2129, %v2201
  %v2203 = vpop.f32.mrf.mxu0
  %v2204 = vadd.f32 %v2131, %v2203
  %v2205 = vpop.f32.mrf.mxu0
  %v2206 = vadd.f32 %v2133, %v2205
  %2207 = vmatprep.mubr.bf16.mxu0 0
  %2208 = vmatmul.mubr.bf16.gmra.mxu0 %v1639
  %v2209 = vpop.f32.mrf.mxu0
  %v2210 = vadd.f32 %v2137, %v2209
  %v2211 = vpop.f32.mrf.mxu0
  %v2212 = vadd.f32 %v2139, %v2211
  %v2213 = vpop.f32.mrf.mxu0
  %v2214 = vadd.f32 %v2141, %v2213
  %v2215 = vpop.f32.mrf.mxu0
  %v2216 = vadd.f32 %v2143, %v2215
  %2217 = vmatprep.mubr.bf16.mxu0 0
  %2218 = vmatmul.mubr.bf16.gmra.mxu0 %v1642
  %v2219 = vpop.f32.mrf.mxu0
  %v2220 = vadd.f32 %v2147, %v2219
  %v2221 = vpop.f32.mrf.mxu0
  %v2222 = vadd.f32 %v2149, %v2221
  %v2223 = vpop.f32.mrf.mxu0
  %v2224 = vadd.f32 %v2151, %v2223
  %v2225 = vpop.f32.mrf.mxu0
  %v2226 = vadd.f32 %v2153, %v2225
  %2227 = vdwg.mxu0
  %v2228 = vld [vmem:[%s4] sm:$0xf]
  %v2230 = vlaneseq
  %v2231 = vshrl.u32 %v2230, 7
  %v2232 = vsub.s32 0, %v2231
  %v2233 = vrot.slane %v2228, %v2232
  %v2234 = vlaneseq
  %v2235 = vshrl.u32 %v2234, 7
  %v2236 = vsub.s32 1, %v2235
  %v2237 = vrot.slane %v2228, %v2236
  %v2238 = vlaneseq
  %v2239 = vshrl.u32 %v2238, 7
  %v2240 = vsub.s32 2, %v2239
  %v2241 = vrot.slane %v2228, %v2240
  %v2242 = vlaneseq
  %v2243 = vshrl.u32 %v2242, 7
  %v2244 = vsub.s32 3, %v2243
  %v2245 = vrot.slane %v2228, %v2244
  %v2250 = vadd.f32 %v1898, %v2233
  %v2251 = vadd.f32 %v1900, %v2237
  %v2252 = vadd.f32 %v2190, %v2241
  %v2253 = vadd.f32 %v2192, %v2245
  %v2254 = vadd.f32 %v1902, %v2233
  %v2255 = vadd.f32 %v1904, %v2237
  %v2256 = vadd.f32 %v2194, %v2241
  %v2257 = vadd.f32 %v2196, %v2245
  %v2258 = vadd.f32 %v1908, %v2233
  %v2259 = vadd.f32 %v1910, %v2237
  %v2260 = vadd.f32 %v2200, %v2241
  %v2261 = vadd.f32 %v2202, %v2245
  %v2262 = vadd.f32 %v1912, %v2233
  %v2263 = vadd.f32 %v1914, %v2237
  %v2264 = vadd.f32 %v2204, %v2241
  %v2265 = vadd.f32 %v2206, %v2245
  %v2266 = vadd.f32 %v1918, %v2233
  %v2267 = vadd.f32 %v1920, %v2237
  %v2268 = vadd.f32 %v2210, %v2241
  %v2269 = vadd.f32 %v2212, %v2245
  %v2270 = vadd.f32 %v1922, %v2233
  %v2271 = vadd.f32 %v1924, %v2237
  %v2272 = vadd.f32 %v2214, %v2241
  %v2273 = vadd.f32 %v2216, %v2245
  %v2274 = vadd.f32 %v1928, %v2233
  %v2275 = vadd.f32 %v1930, %v2237
  %v2276 = vadd.f32 %v2220, %v2241
  %v2277 = vadd.f32 %v2222, %v2245
  %v2278 = vadd.f32 %v1932, %v2233
  %v2279 = vadd.f32 %v1934, %v2237
  %v2280 = vadd.f32 %v2224, %v2241
  %v2281 = vadd.f32 %v2226, %v2245
  %v2282 = vmul.f32 %v2250, 0.2
  %v2283 = vmul.f32 %v2251, 0.2
  %v2284 = vmul.f32 %v2252, 0.2
  %v2285 = vmul.f32 %v2253, 0.2
  %v2286 = vmul.f32 %v2254, 0.2
  %v2287 = vmul.f32 %v2255, 0.2
  %v2288 = vmul.f32 %v2256, 0.2
  %v2289 = vmul.f32 %v2257, 0.2
  %v2290 = vmul.f32 %v2258, 0.2
  %v2291 = vmul.f32 %v2259, 0.2
  %v2292 = vmul.f32 %v2260, 0.2
  %v2293 = vmul.f32 %v2261, 0.2
  %v2294 = vmul.f32 %v2262, 0.2
  %v2295 = vmul.f32 %v2263, 0.2
  %v2296 = vmul.f32 %v2264, 0.2
  %v2297 = vmul.f32 %v2265, 0.2
  %v2298 = vmul.f32 %v2266, 0.2
  %v2299 = vmul.f32 %v2267, 0.2
  %v2300 = vmul.f32 %v2268, 0.2
  %v2301 = vmul.f32 %v2269, 0.2
  %v2302 = vmul.f32 %v2270, 0.2
  %v2303 = vmul.f32 %v2271, 0.2
  %v2304 = vmul.f32 %v2272, 0.2
  %v2305 = vmul.f32 %v2273, 0.2
  %v2306 = vmul.f32 %v2274, 0.2
  %v2307 = vmul.f32 %v2275, 0.2
  %v2308 = vmul.f32 %v2276, 0.2
  %v2309 = vmul.f32 %v2277, 0.2
  %v2310 = vmul.f32 %v2278, 0.2
  %v2311 = vmul.f32 %v2279, 0.2
  %v2312 = vmul.f32 %v2280, 0.2
  %v2313 = vmul.f32 %v2281, 0.2
  %v2314 = vmax.f32 %v2250, %v2282
  %v2315 = vmax.f32 %v2251, %v2283
  %v2316 = vmax.f32 %v2252, %v2284
  %v2317 = vmax.f32 %v2253, %v2285
  %v2318 = vmax.f32 %v2254, %v2286
  %v2319 = vmax.f32 %v2255, %v2287
  %v2320 = vmax.f32 %v2256, %v2288
  %v2321 = vmax.f32 %v2257, %v2289
  %v2322 = vmax.f32 %v2258, %v2290
  %v2323 = vmax.f32 %v2259, %v2291
  %v2324 = vmax.f32 %v2260, %v2292
  %v2325 = vmax.f32 %v2261, %v2293
  %v2326 = vmax.f32 %v2262, %v2294
  %v2327 = vmax.f32 %v2263, %v2295
  %v2328 = vmax.f32 %v2264, %v2296
  %v2329 = vmax.f32 %v2265, %v2297
  %v2330 = vmax.f32 %v2266, %v2298
  %v2331 = vmax.f32 %v2267, %v2299
  %v2332 = vmax.f32 %v2268, %v2300
  %v2333 = vmax.f32 %v2269, %v2301
  %v2334 = vmax.f32 %v2270, %v2302
  %v2335 = vmax.f32 %v2271, %v2303
  %v2336 = vmax.f32 %v2272, %v2304
  %v2337 = vmax.f32 %v2273, %v2305
  %v2338 = vmax.f32 %v2274, %v2306
  %v2339 = vmax.f32 %v2275, %v2307
  %v2340 = vmax.f32 %v2276, %v2308
  %v2341 = vmax.f32 %v2277, %v2309
  %v2342 = vmax.f32 %v2278, %v2310
  %v2343 = vmax.f32 %v2279, %v2311
  %v2344 = vmax.f32 %v2280, %v2312
  %v2345 = vmax.f32 %v2281, %v2313
  %v2346 = vpack.c.bf16 %v2318, %v2314
  %v2347 = vpack.c.bf16 %v2319, %v2315
  %v2348 = vpack.c.bf16 %v2320, %v2316
  %v2349 = vpack.c.bf16 %v2321, %v2317
  %v2350 = vpack.c.bf16 %v2326, %v2322
  %v2351 = vpack.c.bf16 %v2327, %v2323
  %v2352 = vpack.c.bf16 %v2328, %v2324
  %v2353 = vpack.c.bf16 %v2329, %v2325
  %v2354 = vpack.c.bf16 %v2334, %v2330
  %v2355 = vpack.c.bf16 %v2335, %v2331
  %v2356 = vpack.c.bf16 %v2336, %v2332
  %v2357 = vpack.c.bf16 %v2337, %v2333
  %v2358 = vpack.c.bf16 %v2342, %v2338
  %v2359 = vpack.c.bf16 %v2343, %v2339
  %v2360 = vpack.c.bf16 %v2344, %v2340
  %v2361 = vpack.c.bf16 %v2345, %v2341
  %v2362 = vld [vmem:[%s5] sm:$0xff]
  %v2363 = vld [vmem:[%s5 + $0x8] sm:$0xff]
  %v2364 = vld [vmem:[%s5 + $0x10] sm:$0xff]
  %v2365 = vld [vmem:[%s5 + $0x18] sm:$0xff]
  %v2366 = vld [vmem:[%s5 + $0x20] sm:$0xff]
  %v2367 = vld [vmem:[%s5 + $0x28] sm:$0xff]
  %v2368 = vld [vmem:[%s5 + $0x30] sm:$0xff]
  %v2369 = vld [vmem:[%s5 + $0x38] sm:$0xff]
  %v2370 = vld [vmem:[%s5 + $0x40] sm:$0xff]
  %v2371 = vld [vmem:[%s5 + $0x48] sm:$0xff]
  %v2372 = vld [vmem:[%s5 + $0x50] sm:$0xff]
  %v2373 = vld [vmem:[%s5 + $0x58] sm:$0xff]
  %v2374 = vld [vmem:[%s5 + $0x60] sm:$0xff]
  %v2375 = vld [vmem:[%s5 + $0x68] sm:$0xff]
  %v2376 = vld [vmem:[%s5 + $0x70] sm:$0xff]
  %v2377 = vld [vmem:[%s5 + $0x78] sm:$0xff]
  %v2378 = vld [vmem:[%s5 + $0x80] sm:$0xff]
  %v2379 = vld [vmem:[%s5 + $0x88] sm:$0xff]
  %v2380 = vld [vmem:[%s5 + $0x90] sm:$0xff]
  %v2381 = vld [vmem:[%s5 + $0x98] sm:$0xff]
  %v2382 = vld [vmem:[%s5 + $0xa0] sm:$0xff]
  %v2383 = vld [vmem:[%s5 + $0xa8] sm:$0xff]
  %v2384 = vld [vmem:[%s5 + $0xb0] sm:$0xff]
  %v2385 = vld [vmem:[%s5 + $0xb8] sm:$0xff]
  %v2386 = vld [vmem:[%s5 + $0xc0] sm:$0xff]
  %v2387 = vld [vmem:[%s5 + $0xc8] sm:$0xff]
  %v2388 = vld [vmem:[%s5 + $0xd0] sm:$0xff]
  %v2389 = vld [vmem:[%s5 + $0xd8] sm:$0xff]
  %v2390 = vld [vmem:[%s5 + $0xe0] sm:$0xff]
  %v2391 = vld [vmem:[%s5 + $0xe8] sm:$0xff]
  %v2392 = vld [vmem:[%s5 + $0xf0] sm:$0xff]
  %v2393 = vld [vmem:[%s5 + $0xf8] sm:$0xff]
  %v2394 = vld [vmem:[%s5 + $0x100] sm:$0xff]
  %v2395 = vld [vmem:[%s5 + $0x108] sm:$0xff]
  %v2396 = vld [vmem:[%s5 + $0x110] sm:$0xff]
  %v2397 = vld [vmem:[%s5 + $0x118] sm:$0xff]
  %v2398 = vld [vmem:[%s5 + $0x120] sm:$0xff]
  %v2399 = vld [vmem:[%s5 + $0x128] sm:$0xff]
  %v2400 = vld [vmem:[%s5 + $0x130] sm:$0xff]
  %v2401 = vld [vmem:[%s5 + $0x138] sm:$0xff]
  %v2402 = vld [vmem:[%s5 + $0x140] sm:$0xff]
  %v2403 = vld [vmem:[%s5 + $0x148] sm:$0xff]
  %v2404 = vld [vmem:[%s5 + $0x150] sm:$0xff]
  %v2405 = vld [vmem:[%s5 + $0x158] sm:$0xff]
  %v2406 = vld [vmem:[%s5 + $0x160] sm:$0xff]
  %v2407 = vld [vmem:[%s5 + $0x168] sm:$0xff]
  %v2408 = vld [vmem:[%s5 + $0x170] sm:$0xff]
  %v2409 = vld [vmem:[%s5 + $0x178] sm:$0xff]
  %v2410 = vld [vmem:[%s5 + $0x180] sm:$0xff]
  %v2411 = vld [vmem:[%s5 + $0x188] sm:$0xff]
  %v2412 = vld [vmem:[%s5 + $0x190] sm:$0xff]
  %v2413 = vld [vmem:[%s5 + $0x198] sm:$0xff]
  %v2414 = vld [vmem:[%s5 + $0x1a0] sm:$0xff]
  %v2415 = vld [vmem:[%s5 + $0x1a8] sm:$0xff]
  %v2416 = vld [vmem:[%s5 + $0x1b0] sm:$0xff]
  %v2417 = vld [vmem:[%s5 + $0x1b8] sm:$0xff]
  %v2418 = vld [vmem:[%s5 + $0x1c0] sm:$0xff]
  %v2419 = vld [vmem:[%s5 + $0x1c8] sm:$0xff]
  %v2420 = vld [vmem:[%s5 + $0x1d0] sm:$0xff]
  %v2421 = vld [vmem:[%s5 + $0x1d8] sm:$0xff]
  %v2422 = vld [vmem:[%s5 + $0x1e0] sm:$0xff]
  %v2423 = vld [vmem:[%s5 + $0x1e8] sm:$0xff]
  %v2424 = vld [vmem:[%s5 + $0x1f0] sm:$0xff]
  %v2425 = vld [vmem:[%s5 + $0x1f8] sm:$0xff]
  %v2426 = vld [vmem:[%s6] sm:$0x3]
  %v2428 = vlaneseq
  %v2429 = vshrl.u32 %v2428, 7
  %v2430 = vsub.s32 0, %v2429
  %v2431 = vrot.slane %v2426, %v2430
  %v2432 = vlaneseq
  %v2433 = vshrl.u32 %v2432, 7
  %v2434 = vsub.s32 1, %v2433
  %v2435 = vrot.slane %v2426, %v2434
  %v2502 = vunpack.c.l.b16 %v2362
  %v2503 = vunpack.c.h.b16 %v2362
  %v2504 = vunpack.c.l.b16 %v2363
  %v2505 = vunpack.c.h.b16 %v2363
  %v2506 = vunpack.c.l.b16 %v2364
  %v2507 = vunpack.c.h.b16 %v2364
  %v2508 = vunpack.c.l.b16 %v2365
  %v2509 = vunpack.c.h.b16 %v2365
  %v2510 = vunpack.c.l.b16 %v2366
  %v2511 = vunpack.c.h.b16 %v2366
  %v2512 = vunpack.c.l.b16 %v2367
  %v2513 = vunpack.c.h.b16 %v2367
  %v2514 = vunpack.c.l.b16 %v2368
  %v2515 = vunpack.c.h.b16 %v2368
  %v2516 = vunpack.c.l.b16 %v2369
  %v2517 = vunpack.c.h.b16 %v2369
  %v2518 = vunpack.c.l.b16 %v2370
  %v2519 = vunpack.c.h.b16 %v2370
  %v2520 = vunpack.c.l.b16 %v2371
  %v2521 = vunpack.c.h.b16 %v2371
  %v2522 = vunpack.c.l.b16 %v2372
  %v2523 = vunpack.c.h.b16 %v2372
  %v2524 = vunpack.c.l.b16 %v2373
  %v2525 = vunpack.c.h.b16 %v2373
  %v2526 = vunpack.c.l.b16 %v2374
  %v2527 = vunpack.c.h.b16 %v2374
  %v2528 = vunpack.c.l.b16 %v2375
  %v2529 = vunpack.c.h.b16 %v2375
  %v2530 = vunpack.c.l.b16 %v2376
  %v2531 = vunpack.c.h.b16 %v2376
  %v2532 = vunpack.c.l.b16 %v2377
  %v2533 = vunpack.c.h.b16 %v2377
  %v2534 = vunpack.c.l.b16 %v2378
  %v2535 = vunpack.c.h.b16 %v2378
  %v2536 = vunpack.c.l.b16 %v2379
  %v2537 = vunpack.c.h.b16 %v2379
  %v2538 = vunpack.c.l.b16 %v2380
  %v2539 = vunpack.c.h.b16 %v2380
  %v2540 = vunpack.c.l.b16 %v2381
  %v2541 = vunpack.c.h.b16 %v2381
  %v2542 = vunpack.c.l.b16 %v2382
  %v2543 = vunpack.c.h.b16 %v2382
  %v2544 = vunpack.c.l.b16 %v2383
  %v2545 = vunpack.c.h.b16 %v2383
  %v2546 = vunpack.c.l.b16 %v2384
  %v2547 = vunpack.c.h.b16 %v2384
  %v2548 = vunpack.c.l.b16 %v2385
  %v2549 = vunpack.c.h.b16 %v2385
  %v2550 = vunpack.c.l.b16 %v2386
  %v2551 = vunpack.c.h.b16 %v2386
  %v2552 = vunpack.c.l.b16 %v2387
  %v2553 = vunpack.c.h.b16 %v2387
  %v2554 = vunpack.c.l.b16 %v2388
  %v2555 = vunpack.c.h.b16 %v2388
  %v2556 = vunpack.c.l.b16 %v2389
  %v2557 = vunpack.c.h.b16 %v2389
  %v2558 = vunpack.c.l.b16 %v2390
  %v2559 = vunpack.c.h.b16 %v2390
  %v2560 = vunpack.c.l.b16 %v2391
  %v2561 = vunpack.c.h.b16 %v2391
  %v2562 = vunpack.c.l.b16 %v2392
  %v2563 = vunpack.c.h.b16 %v2392
  %v2564 = vunpack.c.l.b16 %v2393
  %v2565 = vunpack.c.h.b16 %v2393
  %v2566 = vunpack.c.l.b16 %v2394
  %v2567 = vunpack.c.h.b16 %v2394
  %v2568 = vunpack.c.l.b16 %v2395
  %v2569 = vunpack.c.h.b16 %v2395
  %v2570 = vunpack.c.l.b16 %v2396
  %v2571 = vunpack.c.h.b16 %v2396
  %v2572 = vunpack.c.l.b16 %v2397
  %v2573 = vunpack.c.h.b16 %v2397
  %v2574 = vunpack.c.l.b16 %v2398
  %v2575 = vunpack.c.h.b16 %v2398
  %v2576 = vunpack.c.l.b16 %v2399
  %v2577 = vunpack.c.h.b16 %v2399
  %v2578 = vunpack.c.l.b16 %v2400
  %v2579 = vunpack.c.h.b16 %v2400
  %v2580 = vunpack.c.l.b16 %v2401
  %v2581 = vunpack.c.h.b16 %v2401
  %v2582 = vunpack.c.l.b16 %v2402
  %v2583 = vunpack.c.h.b16 %v2402
  %v2584 = vunpack.c.l.b16 %v2403
  %v2585 = vunpack.c.h.b16 %v2403
  %v2586 = vunpack.c.l.b16 %v2404
  %v2587 = vunpack.c.h.b16 %v2404
  %v2588 = vunpack.c.l.b16 %v2405
  %v2589 = vunpack.c.h.b16 %v2405
  %v2590 = vunpack.c.l.b16 %v2406
  %v2591 = vunpack.c.h.b16 %v2406
  %v2592 = vunpack.c.l.b16 %v2407
  %v2593 = vunpack.c.h.b16 %v2407
  %v2594 = vunpack.c.l.b16 %v2408
  %v2595 = vunpack.c.h.b16 %v2408
  %v2596 = vunpack.c.l.b16 %v2409
  %v2597 = vunpack.c.h.b16 %v2409
  %v2598 = vunpack.c.l.b16 %v2410
  %v2599 = vunpack.c.h.b16 %v2410
  %v2600 = vunpack.c.l.b16 %v2411
  %v2601 = vunpack.c.h.b16 %v2411
  %v2602 = vunpack.c.l.b16 %v2412
  %v2603 = vunpack.c.h.b16 %v2412
  %v2604 = vunpack.c.l.b16 %v2413
  %v2605 = vunpack.c.h.b16 %v2413
  %v2606 = vunpack.c.l.b16 %v2414
  %v2607 = vunpack.c.h.b16 %v2414
  %v2608 = vunpack.c.l.b16 %v2415
  %v2609 = vunpack.c.h.b16 %v2415
  %v2610 = vunpack.c.l.b16 %v2416
  %v2611 = vunpack.c.h.b16 %v2416
  %v2612 = vunpack.c.l.b16 %v2417
  %v2613 = vunpack.c.h.b16 %v2417
  %v2614 = vunpack.c.l.b16 %v2418
  %v2615 = vunpack.c.h.b16 %v2418
  %v2616 = vunpack.c.l.b16 %v2419
  %v2617 = vunpack.c.h.b16 %v2419
  %v2618 = vunpack.c.l.b16 %v2420
  %v2619 = vunpack.c.h.b16 %v2420
  %v2620 = vunpack.c.l.b16 %v2421
  %v2621 = vunpack.c.h.b16 %v2421
  %v2622 = vunpack.c.l.b16 %v2422
  %v2623 = vunpack.c.h.b16 %v2422
  %v2624 = vunpack.c.l.b16 %v2423
  %v2625 = vunpack.c.h.b16 %v2423
  %v2626 = vunpack.c.l.b16 %v2424
  %v2627 = vunpack.c.h.b16 %v2424
  %v2628 = vunpack.c.l.b16 %v2425
  %v2629 = vunpack.c.h.b16 %v2425
  %v2630 = vpack.c.b16 %v2504, %v2502
  %v2631 = vpack.c.b16 %v2505, %v2503
  %v2632 = vpack.c.b16 %v2508, %v2506
  %v2633 = vpack.c.b16 %v2509, %v2507
  %v2634 = vpack.c.b16 %v2512, %v2510
  %v2635 = vpack.c.b16 %v2513, %v2511
  %v2636 = vpack.c.b16 %v2516, %v2514
  %v2637 = vpack.c.b16 %v2517, %v2515
  %v2638 = vpack.c.b16 %v2520, %v2518
  %v2639 = vpack.c.b16 %v2521, %v2519
  %v2640 = vpack.c.b16 %v2524, %v2522
  %v2641 = vpack.c.b16 %v2525, %v2523
  %v2642 = vpack.c.b16 %v2528, %v2526
  %v2643 = vpack.c.b16 %v2529, %v2527
  %v2644 = vpack.c.b16 %v2532, %v2530
  %v2645 = vpack.c.b16 %v2533, %v2531
  %v2646 = vpack.c.b16 %v2536, %v2534
  %v2647 = vpack.c.b16 %v2537, %v2535
  %v2648 = vpack.c.b16 %v2540, %v2538
  %v2649 = vpack.c.b16 %v2541, %v2539
  %v2650 = vpack.c.b16 %v2544, %v2542
  %v2651 = vpack.c.b16 %v2545, %v2543
  %v2652 = vpack.c.b16 %v2548, %v2546
  %v2653 = vpack.c.b16 %v2549, %v2547
  %v2654 = vpack.c.b16 %v2552, %v2550
  %v2655 = vpack.c.b16 %v2553, %v2551
  %v2656 = vpack.c.b16 %v2556, %v2554
  %v2657 = vpack.c.b16 %v2557, %v2555
  %v2658 = vpack.c.b16 %v2560, %v2558
  %v2659 = vpack.c.b16 %v2561, %v2559
  %v2660 = vpack.c.b16 %v2564, %v2562
  %v2661 = vpack.c.b16 %v2565, %v2563
  %v2662 = vpack.c.b16 %v2568, %v2566
  %v2663 = vpack.c.b16 %v2569, %v2567
  %v2664 = vpack.c.b16 %v2572, %v2570
  %v2665 = vpack.c.b16 %v2573, %v2571
  %v2666 = vpack.c.b16 %v2576, %v2574
  %v2667 = vpack.c.b16 %v2577, %v2575
  %v2668 = vpack.c.b16 %v2580, %v2578
  %v2669 = vpack.c.b16 %v2581, %v2579
  %v2670 = vpack.c.b16 %v2584, %v2582
  %v2671 = vpack.c.b16 %v2585, %v2583
  %v2672 = vpack.c.b16 %v2588, %v2586
  %v2673 = vpack.c.b16 %v2589, %v2587
  %v2674 = vpack.c.b16 %v2592, %v2590
  %v2675 = vpack.c.b16 %v2593, %v2591
  %v2676 = vpack.c.b16 %v2596, %v2594
  %v2677 = vpack.c.b16 %v2597, %v2595
  %v2678 = vpack.c.b16 %v2600, %v2598
  %v2679 = vpack.c.b16 %v2601, %v2599
  %v2680 = vpack.c.b16 %v2604, %v2602
  %v2681 = vpack.c.b16 %v2605, %v2603
  %v2682 = vpack.c.b16 %v2608, %v2606
  %v2683 = vpack.c.b16 %v2609, %v2607
  %v2684 = vpack.c.b16 %v2612, %v2610
  %v2685 = vpack.c.b16 %v2613, %v2611
  %v2686 = vpack.c.b16 %v2616, %v2614
  %v2687 = vpack.c.b16 %v2617, %v2615
  %v2688 = vpack.c.b16 %v2620, %v2618
  %v2689 = vpack.c.b16 %v2621, %v2619
  %v2690 = vpack.c.b16 %v2624, %v2622
  %v2691 = vpack.c.b16 %v2625, %v2623
  %v2692 = vpack.c.b16 %v2628, %v2626
  %v2693 = vpack.c.b16 %v2629, %v2627
  %2758 = vmatprep.subr.bf16.mxu0 %v2645
  %2759 = vmatpush1.bf16.msra.mxu0 %v2644
  %2760 = vmatprep.subr.bf16.mxu0 %v2643
  %2761 = vmatpush1.bf16.msra.mxu0 %v2642
  %2762 = vmatprep.subr.bf16.mxu0 %v2641
  %2763 = vmatpush1.bf16.msra.mxu0 %v2640
  %2764 = vmatprep.subr.bf16.mxu0 %v2639
  %2765 = vmatpush1.bf16.msra.mxu0 %v2638
  %2766 = vmatprep.subr.bf16.mxu0 %v2637
  %2767 = vmatpush1.bf16.msra.mxu0 %v2636
  %2768 = vmatprep.subr.bf16.mxu0 %v2635
  %2769 = vmatpush1.bf16.msra.mxu0 %v2634
  %2770 = vmatprep.subr.bf16.mxu0 %v2633
  %2771 = vmatpush1.bf16.msra.mxu0 %v2632
  %2772 = vmatprep.subr.bf16.mxu0 %v2631
  %2773 = vmatpush1.bf16.msra.mxu0 %v2630
  %2774 = vmatprep.subr.bf16.mxu0 %v2661
  %2775 = vmatpush2.bf16.msra.mxu0 %v2660
  %2776 = vmatprep.subr.bf16.mxu0 %v2659
  %2777 = vmatpush2.bf16.msra.mxu0 %v2658
  %2778 = vmatprep.subr.bf16.mxu0 %v2657
  %2779 = vmatpush2.bf16.msra.mxu0 %v2656
  %2780 = vmatprep.subr.bf16.mxu0 %v2655
  %2781 = vmatpush2.bf16.msra.mxu0 %v2654
  %2782 = vmatprep.subr.bf16.mxu0 %v2653
  %2783 = vmatpush2.bf16.msra.mxu0 %v2652
  %2784 = vmatprep.subr.bf16.mxu0 %v2651
  %2785 = vmatpush2.bf16.msra.mxu0 %v2650
  %2786 = vmatprep.subr.bf16.mxu0 %v2649
  %2787 = vmatpush2.bf16.msra.mxu0 %v2648
  %2788 = vmatprep.subr.bf16.mxu0 %v2647
  %2789 = vmatpush2.bf16.msra.mxu0 %v2646
  %2790 = vmatprep.mubr.bf16.mxu0 %v2347
  %2791 = vmatmul.mubr.bf16.gmra.mxu0 %v2346
  %v2792 = vpop.f32.mrf.mxu0
  %v2793 = vadd.f32 %v2431, %v2792
  %v2794 = vpop.f32.mrf.mxu0
  %v2795 = vadd.f32 %v2435, %v2794
  %v2796 = vpop.f32.mrf.mxu0
  %v2797 = vadd.f32 %v2431, %v2796
  %v2798 = vpop.f32.mrf.mxu0
  %v2799 = vadd.f32 %v2435, %v2798
  %2800 = vmatprep.mubr.bf16.mxu0 %v2351
  %2801 = vmatmul.mubr.bf16.gmra.mxu0 %v2350
  %v2802 = vpop.f32.mrf.mxu0
  %v2803 = vadd.f32 %v2431, %v2802
  %v2804 = vpop.f32.mrf.mxu0
  %v2805 = vadd.f32 %v2435, %v2804
  %v2806 = vpop.f32.mrf.mxu0
  %v2807 = vadd.f32 %v2431, %v2806
  %v2808 = vpop.f32.mrf.mxu0
  %v2809 = vadd.f32 %v2435, %v2808
  %2810 = vmatprep.mubr.bf16.mxu0 %v2355
  %2811 = vmatmul.mubr.bf16.gmra.mxu0 %v2354
  %v2812 = vpop.f32.mrf.mxu0
  %v2813 = vadd.f32 %v2431, %v2812
  %v2814 = vpop.f32.mrf.mxu0
  %v2815 = vadd.f32 %v2435, %v2814
  %v2816 = vpop.f32.mrf.mxu0
  %v2817 = vadd.f32 %v2431, %v2816
  %v2818 = vpop.f32.mrf.mxu0
  %v2819 = vadd.f32 %v2435, %v2818
  %2820 = vmatprep.mubr.bf16.mxu0 %v2359
  %2821 = vmatmul.mubr.bf16.gmra.mxu0 %v2358
  %v2822 = vpop.f32.mrf.mxu0
  %v2823 = vadd.f32 %v2431, %v2822
  %v2824 = vpop.f32.mrf.mxu0
  %v2825 = vadd.f32 %v2435, %v2824
  %v2826 = vpop.f32.mrf.mxu0
  %v2827 = vadd.f32 %v2431, %v2826
  %v2828 = vpop.f32.mrf.mxu0
  %v2829 = vadd.f32 %v2435, %v2828
  %2830 = vdwg.mxu0
  %2831 = vmatprep.subr.bf16.mxu0 %v2677
  %2832 = vmatpush1.bf16.msra.mxu0 %v2676
  %2833 = vmatprep.subr.bf16.mxu0 %v2675
  %2834 = vmatpush1.bf16.msra.mxu0 %v2674
  %2835 = vmatprep.subr.bf16.mxu0 %v2673
  %2836 = vmatpush1.bf16.msra.mxu0 %v2672
  %2837 = vmatprep.subr.bf16.mxu0 %v2671
  %2838 = vmatpush1.bf16.msra.mxu0 %v2670
  %2839 = vmatprep.subr.bf16.mxu0 %v2669
  %2840 = vmatpush1.bf16.msra.mxu0 %v2668
  %2841 = vmatprep.subr.bf16.mxu0 %v2667
  %2842 = vmatpush1.bf16.msra.mxu0 %v2666
  %2843 = vmatprep.subr.bf16.mxu0 %v2665
  %2844 = vmatpush1.bf16.msra.mxu0 %v2664
  %2845 = vmatprep.subr.bf16.mxu0 %v2663
  %2846 = vmatpush1.bf16.msra.mxu0 %v2662
  %2847 = vmatprep.subr.bf16.mxu0 %v2693
  %2848 = vmatpush2.bf16.msra.mxu0 %v2692
  %2849 = vmatprep.subr.bf16.mxu0 %v2691
  %2850 = vmatpush2.bf16.msra.mxu0 %v2690
  %2851 = vmatprep.subr.bf16.mxu0 %v2689
  %2852 = vmatpush2.bf16.msra.mxu0 %v2688
  %2853 = vmatprep.subr.bf16.mxu0 %v2687
  %2854 = vmatpush2.bf16.msra.mxu0 %v2686
  %2855 = vmatprep.subr.bf16.mxu0 %v2685
  %2856 = vmatpush2.bf16.msra.mxu0 %v2684
  %2857 = vmatprep.subr.bf16.mxu0 %v2683
  %2858 = vmatpush2.bf16.msra.mxu0 %v2682
  %2859 = vmatprep.subr.bf16.mxu0 %v2681
  %2860 = vmatpush2.bf16.msra.mxu0 %v2680
  %2861 = vmatprep.subr.bf16.mxu0 %v2679
  %2862 = vmatpush2.bf16.msra.mxu0 %v2678
  %2863 = vmatprep.mubr.bf16.mxu0 %v2349
  %2864 = vmatmul.mubr.bf16.gmra.mxu0 %v2348
  %v2865 = vpop.f32.mrf.mxu0
  %v2866 = vadd.f32 %v2793, %v2865
  %v2867 = vpop.f32.mrf.mxu0
  %v2868 = vadd.f32 %v2795, %v2867
  %v2869 = vpop.f32.mrf.mxu0
  %v2870 = vadd.f32 %v2797, %v2869
  %v2871 = vpop.f32.mrf.mxu0
  %v2872 = vadd.f32 %v2799, %v2871
  %2873 = vmatprep.mubr.bf16.mxu0 %v2353
  %2874 = vmatmul.mubr.bf16.gmra.mxu0 %v2352
  %v2875 = vpop.f32.mrf.mxu0
  %v2876 = vadd.f32 %v2803, %v2875
  %v2877 = vpop.f32.mrf.mxu0
  %v2878 = vadd.f32 %v2805, %v2877
  %v2879 = vpop.f32.mrf.mxu0
  %v2880 = vadd.f32 %v2807, %v2879
  %v2881 = vpop.f32.mrf.mxu0
  %v2882 = vadd.f32 %v2809, %v2881
  %2883 = vmatprep.mubr.bf16.mxu0 %v2357
  %2884 = vmatmul.mubr.bf16.gmra.mxu0 %v2356
  %v2885 = vpop.f32.mrf.mxu0
  %v2886 = vadd.f32 %v2813, %v2885
  %v2887 = vpop.f32.mrf.mxu0
  %v2888 = vadd.f32 %v2815, %v2887
  %v2889 = vpop.f32.mrf.mxu0
  %v2890 = vadd.f32 %v2817, %v2889
  %v2891 = vpop.f32.mrf.mxu0
  %v2892 = vadd.f32 %v2819, %v2891
  %2893 = vmatprep.mubr.bf16.mxu0 %v2361
  %2894 = vmatmul.mubr.bf16.gmra.mxu0 %v2360
  %v2895 = vpop.f32.mrf.mxu0
  %v2896 = vadd.f32 %v2823, %v2895
  %v2897 = vpop.f32.mrf.mxu0
  %v2898 = vadd.f32 %v2825, %v2897
  %v2899 = vpop.f32.mrf.mxu0
  %v2900 = vadd.f32 %v2827, %v2899
  %v2901 = vpop.f32.mrf.mxu0
  %v2902 = vadd.f32 %v2829, %v2901
  %2903 = vdwg.mxu0
  %v2904 = vadd.f32 %v2866, %v2870
  %v2905 = vadd.f32 %v2904, %v2876
  %v2906 = vadd.f32 %v2905, %v2880
  %v2907 = vadd.f32 %v2906, %v2886
  %v2908 = vadd.f32 %v2907, %v2890
  %v2909 = vadd.f32 %v2908, %v2896
  %v2910 = vadd.f32 %v2909, %v2900
  %v2911 = vrot.slane %v2910, 4
  %v2912 = vadd.f32 %v2910, %v2911
  %v2913 = vrot.slane %v2912, 2
  %v2914 = vadd.f32 %v2912, %v2913
  %v2915 = vrot.slane %v2914, 1
  %v2916 = vadd.f32 %v2914, %v2915
  %v2917 = vadd.f32 %v2868, %v2872
  %v2918 = vadd.f32 %v2917, %v2878
  %v2919 = vadd.f32 %v2918, %v2882
  %v2920 = vadd.f32 %v2919, %v2888
  %v2921 = vadd.f32 %v2920, %v2892
  %v2922 = vadd.f32 %v2921, %v2898
  %v2923 = vadd.f32 %v2922, %v2902
  %v2924 = vrot.slane %v2923, 4
  %v2925 = vadd.f32 %v2923, %v2924
  %v2926 = vrot.slane %v2925, 2
  %v2927 = vadd.f32 %v2925, %v2926
  %v2928 = vrot.slane %v2927, 1
  %v2929 = vadd.f32 %v2927, %v2928
  %v2930 = vmul.f32 %v2916, 0.015625
  %v2931 = vmul.f32 %v2929, 0.015625
  %v2932 = vmul.f32 %v2866, %v2866
  %v2933 = vmul.f32 %v2868, %v2868
  %v2934 = vmul.f32 %v2870, %v2870
  %v2935 = vmul.f32 %v2872, %v2872
  %v2936 = vmul.f32 %v2876, %v2876
  %v2937 = vmul.f32 %v2878, %v2878
  %v2938 = vmul.f32 %v2880, %v2880
  %v2939 = vmul.f32 %v2882, %v2882
  %v2940 = vmul.f32 %v2886, %v2886
  %v2941 = vmul.f32 %v2888, %v2888
  %v2942 = vmul.f32 %v2890, %v2890
  %v2943 = vmul.f32 %v2892, %v2892
  %v2944 = vmul.f32 %v2896, %v2896
  %v2945 = vmul.f32 %v2898, %v2898
  %v2946 = vmul.f32 %v2900, %v2900
  %v2947 = vmul.f32 %v2902, %v2902
  %v2948 = vadd.f32 %v2932, %v2934
  %v2949 = vadd.f32 %v2948, %v2936
  %v2950 = vadd.f32 %v2949, %v2938
  %v2951 = vadd.f32 %v2950, %v2940
  %v2952 = vadd.f32 %v2951, %v2942
  %v2953 = vadd.f32 %v2952, %v2944
  %v2954 = vadd.f32 %v2953, %v2946
  %v2955 = vrot.slane %v2954, 4
  %v2956 = vadd.f32 %v2954, %v2955
  %v2957 = vrot.slane %v2956, 2
  %v2958 = vadd.f32 %v2956, %v2957
  %v2959 = vrot.slane %v2958, 1
  %v2960 = vadd.f32 %v2958, %v2959
  %v2961 = vadd.f32 %v2933, %v2935
  %v2962 = vadd.f32 %v2961, %v2937
  %v2963 = vadd.f32 %v2962, %v2939
  %v2964 = vadd.f32 %v2963, %v2941
  %v2965 = vadd.f32 %v2964, %v2943
  %v2966 = vadd.f32 %v2965, %v2945
  %v2967 = vadd.f32 %v2966, %v2947
  %v2968 = vrot.slane %v2967, 4
  %v2969 = vadd.f32 %v2967, %v2968
  %v2970 = vrot.slane %v2969, 2
  %v2971 = vadd.f32 %v2969, %v2970
  %v2972 = vrot.slane %v2971, 1
  %v2973 = vadd.f32 %v2971, %v2972
  %v2974 = vmul.f32 %v2960, 0.015625
  %v2975 = vmul.f32 %v2973, 0.015625
  %v2976 = vmul.f32 %v2930, %v2930
  %v2977 = vmul.f32 %v2931, %v2931
  %v2978 = vsub.f32 %v2974, %v2976
  %v2979 = vsub.f32 %v2975, %v2977
  %v2980 = vld [vmem:[%s7] sm:$0x3]
  %v2981 = vadd.f32 %v2978, 1e-05
  %v2982 = vadd.f32 %v2979, 1e-05
  %v2983 = vrsqrt.pop %v2981
  %v2984 = vrsqrt.pop %v2982
  %v2987 = vcombine.low %v2983, %v2984
  %v2989 = vunpack.c.l.s4 1966171168
  %v2990 = vunpack.c.0.s8 %v2989
  %v2991 = vlaneseq
  %v2992 = vshrl.u32 %v2991, 7
  %v2993 = vsub.s32 %v2990, %v2992
  %v2994 = vrot.slane %v2987, %v2993
  %v2996 = vunpack.c.l.s4 1966171168
  %v2997 = vunpack.c.0.s8 %v2996
  %v2998 = vlaneseq
  %v2999 = vshrl.u32 %v2998, 7
  %v3000 = vsub.s32 %v2997, %v2999
  %v3001 = vrot.slane %v2994, %v3000
  %v3003 = vmul.f32 %v2980, %v3001
  %v3004 = vld [vmem:[%s8] sm:$0x3]
  %v3006 = vlaneseq
  %v3007 = vshrl.u32 %v3006, 7
  %v3008 = vsub.s32 0, %v3007
  %v3009 = vrot.slane %v3003, %v3008
  %v3010 = vlaneseq
  %v3011 = vshrl.u32 %v3010, 7
  %v3012 = vsub.s32 1, %v3011
  %v3013 = vrot.slane %v3003, %v3012
  %v3016 = vmul.f32 %v2930, %v3009
  %v3017 = vmul.f32 %v2931, %v3013
  %v3020 = vcombine.low %v3016, %v3017
  %v3022 = vunpack.c.l.s4 1966171168
  %v3023 = vunpack.c.0.s8 %v3022
  %v3024 = vlaneseq
  %v3025 = vshrl.u32 %v3024, 7
  %v3026 = vsub.s32 %v3023, %v3025
  %v3027 = vrot.slane %v3020, %v3026
  %v3029 = vunpack.c.l.s4 1966171168
  %v3030 = vunpack.c.0.s8 %v3029
  %v3031 = vlaneseq
  %v3032 = vshrl.u32 %v3031, 7
  %v3033 = vsub.s32 %v3030, %v3032
  %v3034 = vrot.slane %v3027, %v3033
  %v3036 = vsub.f32 %v3004, %v3034
  %v3037 = vmul.f32 %v2866, %v3009
  %v3038 = vmul.f32 %v2868, %v3013
  %v3039 = vmul.f32 %v2870, %v3009
  %v3040 = vmul.f32 %v2872, %v3013
  %v3041 = vmul.f32 %v2876, %v3009
  %v3042 = vmul.f32 %v2878, %v3013
  %v3043 = vmul.f32 %v2880, %v3009
  %v3044 = vmul.f32 %v2882, %v3013
  %v3045 = vmul.f32 %v2886, %v3009
  %v3046 = vmul.f32 %v2888, %v3013
  %v3047 = vmul.f32 %v2890, %v3009
  %v3048 = vmul.f32 %v2892, %v3013
  %v3049 = vmul.f32 %v2896, %v3009
  %v3050 = vmul.f32 %v2898, %v3013
  %v3051 = vmul.f32 %v2900, %v3009
  %v3052 = vmul.f32 %v2902, %v3013
  %v3054 = vlaneseq
  %v3055 = vshrl.u32 %v3054, 7
  %v3056 = vsub.s32 0, %v3055
  %v3057 = vrot.slane %v3036, %v3056
  %v3058 = vlaneseq
  %v3059 = vshrl.u32 %v3058, 7
  %v3060 = vsub.s32 1, %v3059
  %v3061 = vrot.slane %v3036, %v3060
  %v3064 = vadd.f32 %v3037, %v3057
  %v3065 = vadd.f32 %v3038, %v3061
  %v3066 = vadd.f32 %v3039, %v3057
  %v3067 = vadd.f32 %v3040, %v3061
  %v3068 = vadd.f32 %v3041, %v3057
  %v3069 = vadd.f32 %v3042, %v3061
  %v3070 = vadd.f32 %v3043, %v3057
  %v3071 = vadd.f32 %v3044, %v3061
  %v3072 = vadd.f32 %v3045, %v3057
  %v3073 = vadd.f32 %v3046, %v3061
  %v3074 = vadd.f32 %v3047, %v3057
  %v3075 = vadd.f32 %v3048, %v3061
  %v3076 = vadd.f32 %v3049, %v3057
  %v3077 = vadd.f32 %v3050, %v3061
  %v3078 = vadd.f32 %v3051, %v3057
  %v3079 = vadd.f32 %v3052, %v3061
  %v3080 = vmul.f32 %v3064, 0.2
  %v3081 = vmul.f32 %v3065, 0.2
  %v3082 = vmul.f32 %v3066, 0.2
  %v3083 = vmul.f32 %v3067, 0.2
  %v3084 = vmul.f32 %v3068, 0.2
  %v3085 = vmul.f32 %v3069, 0.2
  %v3086 = vmul.f32 %v3070, 0.2
  %v3087 = vmul.f32 %v3071, 0.2
  %v3088 = vmul.f32 %v3072, 0.2
  %v3089 = vmul.f32 %v3073, 0.2
  %v3090 = vmul.f32 %v3074, 0.2
  %v3091 = vmul.f32 %v3075, 0.2
  %v3092 = vmul.f32 %v3076, 0.2
  %v3093 = vmul.f32 %v3077, 0.2
  %v3094 = vmul.f32 %v3078, 0.2
  %v3095 = vmul.f32 %v3079, 0.2
  %v3096 = vmax.f32 %v3064, %v3080
  %v3097 = vmax.f32 %v3065, %v3081
  %v3098 = vmax.f32 %v3066, %v3082
  %v3099 = vmax.f32 %v3067, %v3083
  %v3100 = vmax.f32 %v3068, %v3084
  %v3101 = vmax.f32 %v3069, %v3085
  %v3102 = vmax.f32 %v3070, %v3086
  %v3103 = vmax.f32 %v3071, %v3087
  %v3104 = vmax.f32 %v3072, %v3088
  %v3105 = vmax.f32 %v3073, %v3089
  %v3106 = vmax.f32 %v3074, %v3090
  %v3107 = vmax.f32 %v3075, %v3091
  %v3108 = vmax.f32 %v3076, %v3092
  %v3109 = vmax.f32 %v3077, %v3093
  %v3110 = vmax.f32 %v3078, %v3094
  %v3111 = vmax.f32 %v3079, %v3095
  %v3112 = vpack.c.bf16 %v3098, %v3096
  %v3113 = vpack.c.bf16 %v3099, %v3097
  %v3114 = vpack.c.bf16 %v3102, %v3100
  %v3115 = vpack.c.bf16 %v3103, %v3101
  %v3116 = vpack.c.bf16 %v3106, %v3104
  %v3117 = vpack.c.bf16 %v3107, %v3105
  %v3118 = vpack.c.bf16 %v3110, %v3108
  %v3119 = vpack.c.bf16 %v3111, %v3109
  %v3120 = vld [vmem:[%s9] sm:$0xf]
  %v3121 = vld [vmem:[%s9 + $0x4] sm:$0xf]
  %v3122 = vld [vmem:[%s9 + $0x8] sm:$0xf]
  %v3123 = vld [vmem:[%s9 + $0xc] sm:$0xf]
  %v3124 = vld [vmem:[%s9 + $0x10] sm:$0xf]
  %v3125 = vld [vmem:[%s9 + $0x14] sm:$0xf]
  %v3126 = vld [vmem:[%s9 + $0x18] sm:$0xf]
  %v3127 = vld [vmem:[%s9 + $0x1c] sm:$0xf]
  %v3128 = vld [vmem:[%s9 + $0x20] sm:$0xf]
  %v3129 = vld [vmem:[%s9 + $0x24] sm:$0xf]
  %v3130 = vld [vmem:[%s9 + $0x28] sm:$0xf]
  %v3131 = vld [vmem:[%s9 + $0x2c] sm:$0xf]
  %v3132 = vld [vmem:[%s9 + $0x30] sm:$0xf]
  %v3133 = vld [vmem:[%s9 + $0x34] sm:$0xf]
  %v3134 = vld [vmem:[%s9 + $0x38] sm:$0xf]
  %v3135 = vld [vmem:[%s9 + $0x3c] sm:$0xf]
  %v3136 = vld [vmem:[%s9 + $0x40] sm:$0xf]
  %v3137 = vld [vmem:[%s9 + $0x44] sm:$0xf]
  %v3138 = vld [vmem:[%s9 + $0x48] sm:$0xf]
  %v3139 = vld [vmem:[%s9 + $0x4c] sm:$0xf]
  %v3140 = vld [vmem:[%s9 + $0x50] sm:$0xf]
  %v3141 = vld [vmem:[%s9 + $0x54] sm:$0xf]
  %v3142 = vld [vmem:[%s9 + $0x58] sm:$0xf]
  %v3143 = vld [vmem:[%s9 + $0x5c] sm:$0xf]
  %v3144 = vld [vmem:[%s9 + $0x60] sm:$0xf]
  %v3145 = vld [vmem:[%s9 + $0x64] sm:$0xf]
  %v3146 = vld [vmem:[%s9 + $0x68] sm:$0xf]
  %v3147 = vld [vmem:[%s9 + $0x6c] sm:$0xf]
  %v3148 = vld [vmem:[%s9 + $0x70] sm:$0xf]
  %v3149 = vld [vmem:[%s9 + $0x74] sm:$0xf]
  %v3150 = vld [vmem:[%s9 + $0x78] sm:$0xf]
  %v3151 = vld [vmem:[%s9 + $0x7c] sm:$0xf]
  %v3152 = vld [vmem:[%s10] sm:$0x1]
  %v3154 = vlaneseq
  %v3155 = vshrl.u32 %v3154, 7
  %v3156 = vsub.s32 0, %v3155
  %v3157 = vrot.slane %v3152, %v3156
  %v3191 = vunpack.c.l.b16 %v3120
  %v3192 = vunpack.c.l.b16 %v3121
  %v3193 = vunpack.c.l.b16 %v3122
  %v3194 = vunpack.c.l.b16 %v3123
  %v3195 = vunpack.c.l.b16 %v3124
  %v3196 = vunpack.c.l.b16 %v3125
  %v3197 = vunpack.c.l.b16 %v3126
  %v3198 = vunpack.c.l.b16 %v3127
  %v3199 = vunpack.c.l.b16 %v3128
  %v3200 = vunpack.c.l.b16 %v3129
  %v3201 = vunpack.c.l.b16 %v3130
  %v3202 = vunpack.c.l.b16 %v3131
  %v3203 = vunpack.c.l.b16 %v3132
  %v3204 = vunpack.c.l.b16 %v3133
  %v3205 = vunpack.c.l.b16 %v3134
  %v3206 = vunpack.c.l.b16 %v3135
  %v3207 = vunpack.c.l.b16 %v3136
  %v3208 = vunpack.c.l.b16 %v3137
  %v3209 = vunpack.c.l.b16 %v3138
  %v3210 = vunpack.c.l.b16 %v3139
  %v3211 = vunpack.c.l.b16 %v3140
  %v3212 = vunpack.c.l.b16 %v3141
  %v3213 = vunpack.c.l.b16 %v3142
  %v3214 = vunpack.c.l.b16 %v3143
  %v3215 = vunpack.c.l.b16 %v3144
  %v3216 = vunpack.c.l.b16 %v3145
  %v3217 = vunpack.c.l.b16 %v3146
  %v3218 = vunpack.c.l.b16 %v3147
  %v3219 = vunpack.c.l.b16 %v3148
  %v3220 = vunpack.c.l.b16 %v3149
  %v3221 = vunpack.c.l.b16 %v3150
  %v3222 = vunpack.c.l.b16 %v3151
  %v3223 = vpack.c.b16 %v3192, %v3191
  %v3224 = vpack.c.b16 %v3194, %v3193
  %v3225 = vpack.c.b16 %v3196, %v3195
  %v3226 = vpack.c.b16 %v3198, %v3197
  %v3227 = vpack.c.b16 %v3200, %v3199
  %v3228 = vpack.c.b16 %v3202, %v3201
  %v3229 = vpack.c.b16 %v3204, %v3203
  %v3230 = vpack.c.b16 %v3206, %v3205
  %v3231 = vpack.c.b16 %v3208, %v3207
  %v3232 = vpack.c.b16 %v3210, %v3209
  %v3233 = vpack.c.b16 %v3212, %v3211
  %v3234 = vpack.c.b16 %v3214, %v3213
  %v3235 = vpack.c.b16 %v3216, %v3215
  %v3236 = vpack.c.b16 %v3218, %v3217
  %v3237 = vpack.c.b16 %v3220, %v3219
  %v3238 = vpack.c.b16 %v3222, %v3221
  %3255 = vmatprep.subr.bf16.mxu0 0
  %3256 = vmatpush1.bf16.msra.mxu0 %v3230
  %3257 = vmatprep.subr.bf16.mxu0 0
  %3258 = vmatpush1.bf16.msra.mxu0 %v3229
  %3259 = vmatprep.subr.bf16.mxu0 0
  %3260 = vmatpush1.bf16.msra.mxu0 %v3228
  %3261 = vmatprep.subr.bf16.mxu0 0
  %3262 = vmatpush1.bf16.msra.mxu0 %v3227
  %3263 = vmatprep.subr.bf16.mxu0 0
  %3264 = vmatpush1.bf16.msra.mxu0 %v3226
  %3265 = vmatprep.subr.bf16.mxu0 0
  %3266 = vmatpush1.bf16.msra.mxu0 %v3225
  %3267 = vmatprep.subr.bf16.mxu0 0
  %3268 = vmatpush1.bf16.msra.mxu0 %v3224
  %3269 = vmatprep.subr.bf16.mxu0 0
  %3270 = vmatpush1.bf16.msra.mxu0 %v3223
  %3271 = vmatprep.subr.bf16.mxu0 0
  %3272 = vmatpush2.bf16.msra.mxu0 %v3238
  %3273 = vmatprep.subr.bf16.mxu0 0
  %3274 = vmatpush2.bf16.msra.mxu0 %v3237
  %3275 = vmatprep.subr.bf16.mxu0 0
  %3276 = vmatpush2.bf16.msra.mxu0 %v3236
  %3277 = vmatprep.subr.bf16.mxu0 0
  %3278 = vmatpush2.bf16.msra.mxu0 %v3235
  %3279 = vmatprep.subr.bf16.mxu0 0
  %3280 = vmatpush2.bf16.msra.mxu0 %v3234
  %3281 = vmatprep.subr.bf16.mxu0 0
  %3282 = vmatpush2.bf16.msra.mxu0 %v3233
  %3283 = vmatprep.subr.bf16.mxu0 0
  %3284 = vmatpush2.bf16.msra.mxu0 %v3232
  %3285 = vmatprep.subr.bf16.mxu0 0
  %3286 = vmatpush2.bf16.msra.mxu0 %v3231
  %3287 = vmatprep.mubr.bf16.mxu0 %v3113
  %3288 = vmatmul.mubr.bf16.gmra.mxu0 %v3112
  %v3289 = vpop.f32.mrf.mxu0
  %v3290 = vadd.f32 %v3157, %v3289
  %v3291 = vpop.f32.mrf.mxu0
  %v3292 = vpop.f32.mrf.mxu0
  %v3293 = vadd.f32 %v3157, %v3292
  %v3294 = vpop.f32.mrf.mxu0
  %3295 = vmatprep.mubr.bf16.mxu0 %v3115
  %3296 = vmatmul.mubr.bf16.gmra.mxu0 %v3114
  %v3297 = vpop.f32.mrf.mxu0
  %v3298 = vadd.f32 %v3157, %v3297
  %v3299 = vpop.f32.mrf.mxu0
  %v3300 = vpop.f32.mrf.mxu0
  %v3301 = vadd.f32 %v3157, %v3300
  %v3302 = vpop.f32.mrf.mxu0
  %3303 = vmatprep.mubr.bf16.mxu0 %v3117
  %3304 = vmatmul.mubr.bf16.gmra.mxu0 %v3116
  %v3305 = vpop.f32.mrf.mxu0
  %v3306 = vadd.f32 %v3157, %v3305
  %v3307 = vpop.f32.mrf.mxu0
  %v3308 = vpop.f32.mrf.mxu0
  %v3309 = vadd.f32 %v3157, %v3308
  %v3310 = vpop.f32.mrf.mxu0
  %3311 = vmatprep.mubr.bf16.mxu0 %v3119
  %3312 = vmatmul.mubr.bf16.gmra.mxu0 %v3118
  %v3313 = vpop.f32.mrf.mxu0
  %v3314 = vadd.f32 %v3157, %v3313
  %v3315 = vpop.f32.mrf.mxu0
  %v3316 = vpop.f32.mrf.mxu0
  %v3317 = vadd.f32 %v3157, %v3316
  %v3318 = vpop.f32.mrf.mxu0
  %3319 = vdwg.mxu0
  %v3320 = vxor.u32 %v3290, 2147483648
  %v3321 = vxor.u32 %v3293, 2147483648
  %v3322 = vxor.u32 %v3298, 2147483648
  %v3323 = vxor.u32 %v3301, 2147483648
  %v3324 = vxor.u32 %v3306, 2147483648
  %v3325 = vxor.u32 %v3309, 2147483648
  %v3326 = vxor.u32 %v3314, 2147483648
  %v3327 = vxor.u32 %v3317, 2147483648
  %v3328 = vmul.f32 %v3320, 1.442695
  %v3329 = vpow.pop %v3328
  %v3330 = vmul.f32 %v3321, 1.442695
  %v3331 = vpow.pop %v3330
  %v3332 = vmul.f32 %v3322, 1.442695
  %v3333 = vpow.pop %v3332
  %v3334 = vmul.f32 %v3323, 1.442695
  %v3335 = vpow.pop %v3334
  %v3336 = vmul.f32 %v3324, 1.442695
  %v3337 = vpow.pop %v3336
  %v3338 = vmul.f32 %v3325, 1.442695
  %v3339 = vpow.pop %v3338
  %v3340 = vmul.f32 %v3326, 1.442695
  %v3341 = vpow.pop %v3340
  %v3342 = vmul.f32 %v3327, 1.442695
  %v3343 = vpow.pop %v3342
  %v3344 = vadd.f32 %v3329, 1.0
  %v3345 = vadd.f32 %v3331, 1.0
  %v3346 = vadd.f32 %v3333, 1.0
  %v3347 = vadd.f32 %v3335, 1.0
  %v3348 = vadd.f32 %v3337, 1.0
  %v3349 = vadd.f32 %v3339, 1.0
  %v3350 = vadd.f32 %v3341, 1.0
  %v3351 = vadd.f32 %v3343, 1.0
  %v3352 = vrcp.pop %v3344
  %v3353 = vmul.f32 1.0, %v3352
  %v3354 = vrcp.pop %v3345
  %v3355 = vmul.f32 1.0, %v3354
  %v3356 = vrcp.pop %v3346
  %v3357 = vmul.f32 1.0, %v3356
  %v3358 = vrcp.pop %v3347
  %v3359 = vmul.f32 1.0, %v3358
  %v3360 = vrcp.pop %v3348
  %v3361 = vmul.f32 1.0, %v3360
  %v3362 = vrcp.pop %v3349
  %v3363 = vmul.f32 1.0, %v3362
  %v3364 = vrcp.pop %v3350
  %v3365 = vmul.f32 1.0, %v3364
  %v3366 = vrcp.pop %v3351
  %v3367 = vmul.f32 1.0, %v3366
  %3368 = vst [vmem:[%s11] sm:$0xff] %v3353
  %3369 = vst [vmem:[%s11 + $0x8] sm:$0xff] %v3355
  %3370 = vst [vmem:[%s11 + $0x10] sm:$0xff] %v3357
  %3371 = vst [vmem:[%s11 + $0x18] sm:$0xff] %v3359
  %3372 = vst [vmem:[%s11 + $0x20] sm:$0xff] %v3361
  %3373 = vst [vmem:[%s11 + $0x28] sm:$0xff] %v3363
  %3374 = vst [vmem:[%s11 + $0x30] sm:$0xff] %v3365
  %3375 = vst [vmem:[%s11 + $0x38] sm:$0xff] %v3367
  // Predicated region
  $region46: #{_discriminator_forward.1} parent=0 // pred_check
    _
  $region47: #{_discriminator_forward.1} parent=0 // pred_check_branch
    %3377 = sbr.rel (0) target = $region49
  $region48: #{_discriminator_forward.1} parent=0 // pred_region
    _
  $region49: #{_discriminator_forward.1} parent=0 // pred_fallthru
    _
  // Predicated region
  $region50: #{_discriminator_forward.1} parent=0 // pred_check
    _
  $region51: #{_discriminator_forward.1} parent=0 // pred_check_branch
    %3379 = sbr.rel (0) target = $region53
  $region52: #{_discriminator_forward.1} parent=0 // pred_region
    _
  $region53: #{_discriminator_forward.1} parent=0 // pred_fallthru
    _

</llo_original>
